<compile_context>
chip_gen: v7x
topology: tpu7x:2x2x1
jax: 0.10.0
libtpu: 0.0.40
codegen_flags: <defaults>
</compile_context>

<pallas_src>
import jax
import jax.numpy as jnp
from jax.experimental import pallas as pl
from jax.experimental.pallas import tpu as pltpu

HIDDEN = 32                        # args.HIDDNE_DIM  (3*32 + 1 = 97)
K_SORT = 30                        # SortAggregation k
FEAT = 3 * HIDDEN + 1              # 97 = conv1 kernel size / stride
CONV2_L = K_SORT // 2 - 5 + 1      # 11 conv2 output positions
HEAD_G = 8                         # graphs batched per head grid step
HEAD_HALF_ROWS = (K_SORT // 2) * HEAD_G   # 120 rows (even OR odd slots)
HEAD_ROWS = 2 * HEAD_HALF_ROWS            # 240 rows per head block


def _round_up(v, m):
    return (v + m - 1) // m * m


def _vmem_capacity_bytes():
    try:
        return int(pltpu.get_tpu_info().vmem_capacity_bytes)
    except Exception:
        return 128 * 1024 * 1024       # v5e/v6e default if query unavailable


def _gcn_vmem_limit():
    # ~5/8 of physical VMEM: ~80 MiB on v5e/v6e (128 MiB), ~40 MiB on v7x (64 MiB).
    return int(min(_vmem_capacity_bytes() * 5 // 8, 96 * 1024 * 1024))


def _gcn_tiling(n, f_in, vmem_limit):
    """Pick (n_pad, tm).  Prefer A_hat fully resident (single row tile, A is
    DMA'd once for all 4 layers).  Otherwise stream generation-sized strips."""
    n128 = _round_up(n, 128)

    def resident_bytes(np_):
        a = 2 * 2 * np_ * np_             # bf16 A, assume double-buffered
        o = 2 * 2 * np_ * 4 * HIDDEN      # bf16 resident [h1|h2|h3|h4]
        x = 2 * 2 * np_ * max(f_in, 8)    # bf16 node features
        g = 2 * np_ * HIDDEN              # bf16 projection scratch
        return a + o + x + g + (1 << 20)  # + weights / slack

    if resident_bytes(n128) <= vmem_limit:
        return n128, n128
    tm = 1024 if vmem_limit >= 60 * 1024 * 1024 else 512
    return _round_up(n, tm), tm


# ------------------------------------------------------------ fused GCN stack

def fused_gcn_kernel(a_ref, x_ref, w1_ref, wr_ref, b_ref, o_ref, g_ref):
    l = pl.program_id(0)            # layer index 0..3
    i = pl.program_id(1)            # A_hat row-tile index
    tm = a_ref.shape[0]

    # At the first row tile of each layer, (re)compute g = h_{l-1} @ W_l for
    # ALL nodes (h_0 = x).  h_{l-1} is read back (bf16) from the resident
    # output block, columns (l-1)*32 : l*32.  Static pl.when branches are kept
    # (dynamic lane-offset indexing is not guaranteed to lower cleanly).
    @pl.when(i == 0)
    def _():
        @pl.when(l == 0)
        def _():
            g_ref[...] = jnp.dot(
                x_ref[...], w1_ref[...],
                preferred_element_type=jnp.float32).astype(jnp.bfloat16)

        for layer in (1, 2, 3):
            @pl.when(l == layer)
            def _(layer=layer):
                h_prev = o_ref[:, (layer - 1) * HIDDEN:layer * HIDDEN]   # bf16
                g_ref[...] = jnp.dot(
                    h_prev, wr_ref[layer - 1],
                    preferred_element_type=jnp.float32).astype(jnp.bfloat16)

    # Row-tile SpMM on the MXU: (tm, n_pad) bf16 @ (n_pad, 32) bf16 -> f32 acc.
    acc = jnp.dot(a_ref[...], g_ref[...], preferred_element_type=jnp.float32)

    row0 = pl.multiple_of(i * tm, 128)            # tm is always a 128-multiple
    for layer in range(4):
        @pl.when(l == layer)
        def _(layer=layer):
            y = jnp.tanh(acc + b_ref[layer:layer + 1, :])
            # NOTE: padded node rows get tanh(b_l) != 0 here; this is harmless
            # because A_hat's padded columns are zero and the host drops rows
            # >= n before any consumer sees them.
            o_ref[pl.ds(row0, tm),
                  layer * HIDDEN:(layer + 1) * HIDDEN] = y.astype(jnp.bfloat16)


def fused_gcn(a_pad, x_pad, w1, wr, b, tm, vmem_limit):
    n_pad = a_pad.shape[0]
    f_in = x_pad.shape[1]
    n_tiles = n_pad // tm
    return pl.pallas_call(
        fused_gcn_kernel,
        out_shape=jax.ShapeDtypeStruct((n_pad, 4 * HIDDEN), jnp.bfloat16),
        grid_spec=pltpu.PrefetchScalarGridSpec(
            num_scalar_prefetch=0,
            grid=(4, n_tiles),
            in_specs=[
                pl.BlockSpec((tm, n_pad), lambda l, i: (i, 0)),       # A_hat strip (bf16)
                pl.BlockSpec((n_pad, f_in), lambda l, i: (0, 0)),     # x (resident, bf16)
                pl.BlockSpec((f_in, HIDDEN), lambda l, i: (0, 0)),    # W1 (bf16)
                pl.BlockSpec((3, HIDDEN, HIDDEN), lambda l, i: (0, 0, 0)),  # W2..W4 (bf16)
                pl.BlockSpec((4, HIDDEN), lambda l, i: (0, 0)),       # biases (f32)
            ],
            out_specs=pl.BlockSpec((n_pad, 4 * HIDDEN), lambda l, i: (0, 0)),
            scratch_shapes=[pltpu.VMEM((n_pad, HIDDEN), jnp.bfloat16)],
        ),
        compiler_params=pltpu.CompilerParams(
            # Layer axis is a chain dependency; the row-tile axis shares the
            # resident output block / g scratch, so both stay sequential.
            dimension_semantics=("arbitrary", "arbitrary"),
            vmem_limit_bytes=vmem_limit,
        ),
    )(a_pad, x_pad, w1, wr, b)


def run_gcn(params, x, a_hat, force_tm=None):
    n, f_in = x.shape
    vmem_limit = _gcn_vmem_limit()
    if force_tm is None:
        n_pad, tm = _gcn_tiling(n, f_in, vmem_limit)
    else:
        tm = force_tm
        n_pad = _round_up(n, tm)
    a_pad = jnp.pad(a_hat, ((0, n_pad - n), (0, n_pad - n))).astype(jnp.bfloat16)
    x_pad = jnp.pad(x, ((0, n_pad - n), (0, 0))).astype(jnp.bfloat16)
    h_cat = fused_gcn(a_pad, x_pad,
                      params["gcn1_w"].astype(jnp.bfloat16),
                      params["gcn_wr"].astype(jnp.bfloat16),
                      params["gcn_b"], tm, vmem_limit)
    return h_cat[:n]        # (N, 128) bf16; padded rows (tanh(b_l)) are dropped


# ------------------------------------------------------------ fused conv head

def head_kernel(x_ref, w1_ref, b1_ref, w2_ref, b2_ref,
                w3_ref, b3_ref, w4_ref, b4_ref, o_ref):
    G = HEAD_G
    # conv1 (Conv1d(1,16,97,97)): ONE (240,128)@(128,16) matmul covers all 30
    # pooled slots of all 8 graphs in this group.  Rows 0..119 are even slots,
    # 120..239 odd slots (host-packed, slot-major / graph-minor inside a half).
    pre = jnp.dot(x_ref[...], w1_ref[...],
                  preferred_element_type=jnp.float32) + b1_ref[...]
    pre = jnp.maximum(pre, 0.0)                                        # ReLU
    # MaxPool1d(2,2): pairwise max of the two contiguous halves.
    mp = jnp.maximum(pre[:HEAD_HALF_ROWS, :], pre[HEAD_HALF_ROWS:, :])  # (120,16)

    # conv2 (Conv1d(16,32,5,1)): tap j shifts by j pooled positions == j*8
    # rows, so every slice start is 8-sublane aligned (no relayout copies).
    acc2 = jnp.zeros((CONV2_L * G, 32), jnp.float32) + b2_ref[...]
    for j in range(5):
        acc2 = acc2 + jnp.dot(mp[j * G:j * G + CONV2_L * G, :], w2_ref[j],
                              preferred_element_type=jnp.float32)
    c2 = jnp.maximum(acc2, 0.0)            # (88,32); row t*8+g = pos t, graph g

    # NCL flatten + linear1 fused: z[g] = sum_t c2[t*8+g] @ W3[t]  (M=8 matmuls).
    z = jnp.zeros((G, 128), jnp.float32) + b3_ref[...]
    for t in range(CONV2_L):
        z = z + jnp.dot(c2[t * G:(t + 1) * G, :], w3_ref[t],
                        preferred_element_type=jnp.float32)
    z = jnp.maximum(z, 0.0)
    # TODO(synk): nn.Dropout is identity in eval mode; intentionally skipped.

    # linear2 + sigmoid, lane-dense (8, 128) output (column 0 is the logit).
    o_ref[...] = jax.nn.sigmoid(
        jnp.dot(z, w4_ref[...], preferred_element_type=jnp.float32) + b4_ref[...])


def fused_head(params, pooled):
    bsz, k, feat = pooled.shape                       # (B, 30, 97)
    G = HEAD_G
    half = k // 2                                     # 15
    b_pad = _round_up(max(bsz, 1), G)
    n_groups = b_pad // G
    p = jnp.pad(pooled, ((0, b_pad - bsz), (0, 0), (0, 128 - feat))).astype(jnp.bfloat16)
    xe, xo = p[:, 0::2, :], p[:, 1::2, :]             # (b_pad, 15, 128) each

    def pack(t):   # within a group: row s*8+g <- graph (group*8+g), slot s
        t = t.reshape(n_groups, G, half, 128)
        return t.transpose(0, 2, 1, 3).reshape(n_groups, half * G, 128)

    x_in = jnp.concatenate([pack(xe), pack(xo)], axis=1)      # (n_groups, 240, 128)
    x_in = x_in.reshape(n_groups * HEAD_ROWS, 128)

    out = pl.pallas_call(
        head_kernel,
        out_shape=jax.ShapeDtypeStruct((n_groups * G, 128), jnp.float32),
        grid_spec=pltpu.PrefetchScalarGridSpec(
            num_scalar_prefetch=0,
            grid=(n_groups,),
            in_specs=[
                pl.BlockSpec((HEAD_ROWS, 128), lambda i: (i, 0)),     # packed pooled
                pl.BlockSpec((128, 16), lambda i: (0, 0)),            # conv1 W (bf16)
                pl.BlockSpec((1, 16), lambda i: (0, 0)),              # conv1 b
                pl.BlockSpec((5, 16, 32), lambda i: (0, 0, 0)),       # conv2 W
                pl.BlockSpec((1, 32), lambda i: (0, 0)),              # conv2 b
                pl.BlockSpec((CONV2_L, 32, 128), lambda i: (0, 0, 0)),  # lin1 W
                pl.BlockSpec((1, 128), lambda i: (0, 0)),             # lin1 b
                pl.BlockSpec((128, 128), lambda i: (0, 0)),           # lin2 W (padded)
                pl.BlockSpec((1, 128), lambda i: (0, 0)),             # lin2 b (padded)
            ],
            out_specs=pl.BlockSpec((G, 128), lambda i: (i, 0)),
        ),
        compiler_params=pltpu.CompilerParams(
            dimension_semantics=("parallel",),   # graph groups shard across TCs on v7x
        ),
    )(x_in,
      params["conv1_w"].astype(jnp.bfloat16), params["conv1_b"],
      params["conv2_w"], params["conv2_b"],
      params["lin1_w"], params["lin1_b"],
      params["lin2_w"], params["lin2_b"])
    return out[:bsz, :1]                              # (B, 1)


# ---------------------------------------------------------------- JAX glue

def sort_pool(h, batch, num_graphs, k):
    """PyG SortAggregation: per-graph sort nodes by the last feature channel
    (descending), keep top-k rows, zero-pad graphs with < k nodes.
    NOTE: key = batch*4 - score relies on |score| <= 1 (score is a tanh
    output); the 4.0 separation constant must be > 2 * max|score|."""
    n = h.shape[0]
    score = h[:, -1]
    key = batch.astype(jnp.float32) * 4.0 - score
    order = jnp.argsort(key)
    h_sorted = h[order]
    counts = jnp.zeros((num_graphs,), jnp.int32).at[batch].add(1)
    starts = jnp.concatenate([jnp.zeros((1,), jnp.int32),
                              jnp.cumsum(counts)[:-1].astype(jnp.int32)])
    idx = starts[:, None] + jnp.arange(k, dtype=jnp.int32)[None, :]
    valid = jnp.arange(k)[None, :] < counts[:, None]
    gathered = h_sorted[jnp.clip(idx, 0, n - 1)]
    return jnp.where(valid[..., None], gathered, 0.0)  # (B, k, C)


def normalized_adjacency(edge_index, n):
    src, dst = edge_index[0], edge_index[1]
    a = jnp.zeros((n, n), jnp.float32).at[src, dst].set(1.0)
    a = jnp.maximum(a, a.T)                  # undirected
    a = jnp.maximum(a, jnp.eye(n))           # self loops
    deg = a.sum(axis=1)
    d = 1.0 / jnp.sqrt(deg)
    return a * d[:, None] * d[None, :]


def dgcnn_forward(params, x, a_hat, batch, num_graphs):
    h_cat = run_gcn(params, x, a_hat)                     # (N, 128) bf16
    h = h_cat[:, :FEAT].astype(jnp.float32)               # (N, 97)
    pooled = sort_pool(h, batch, num_graphs, K_SORT)      # (B, 30, 97)
    return fused_head(params, pooled)                     # (B, 1)


# --------------------------------------------------- pure-JAX f32 references

def gcn_reference(params, x, a_hat):
    ws = [params["gcn1_w"], params["gcn_wr"][0],
          params["gcn_wr"][1], params["gcn_wr"][2]]
    h_prev, hs = x, []
    for l in range(4):
        h = jnp.tanh(a_hat @ (h_prev @ ws[l]) + params["gcn_b"][l])
        hs.append(h)
        h_prev = h
    return jnp.concatenate(hs, axis=-1)       # (N, 128); column 96 = gcn4 output


def head_reference(params, pooled):
    w1 = params["conv1_w"][:FEAT]                                     # (97,16)
    c1 = jax.nn.relu(jnp.einsum("bsf,fc->bsc", pooled, w1) + params["conv1_b"][0])
    mp = jnp.maximum(c1[:, 0::2, :], c1[:, 1::2, :])                  # (B,15,16)
    c2 = params["conv2_b"][0]
    for j in range(5):
        c2 = c2 + jnp.einsum("bsc,cd->bsd",
                             mp[:, j:j + CONV2_L, :], params["conv2_w"][j])
    c2 = jax.nn.relu(c2)                                              # (B,11,32)
    z = jax.nn.relu(jnp.einsum("btc,tcd->bd", c2, params["lin1_w"])
                    + params["lin1_b"][0])
    return jax.nn.sigmoid(z @ params["lin2_w"][:, :1] + params["lin2_b"][0, :1])


def init_params(key, dim_in):
    ks = jax.random.split(key, 16)
    w = lambda k, shape: 0.1 * jax.random.normal(k, shape, jnp.float32)
    b = lambda k, shape: 0.05 * jax.random.normal(k, shape, jnp.float32)
    p = {}
    p["gcn1_w"] = w(ks[0], (dim_in, HIDDEN))
    w2 = w(ks[2], (HIDDEN, HIDDEN))
    w3 = w(ks[4], (HIDDEN, HIDDEN))
    w4 = jnp.pad(w(ks[6], (HIDDEN, 1)), ((0, 0), (0, HIDDEN - 1)))   # (32,1)->zero-pad
    p["gcn_wr"] = jnp.stack([w2, w3, w4])                            # (3, 32, 32)
    b1 = b(ks[1], (HIDDEN,)); b2 = b(ks[3], (HIDDEN,)); b3 = b(ks[5], (HIDDEN,))
    b4 = jnp.pad(b(ks[7], (1,)), (0, HIDDEN - 1))
    p["gcn_b"] = jnp.stack([b1, b2, b3, b4])                         # (4, 32)
    # conv1 weight (PyTorch [16,1,97]) stored [97,16], zero-padded to [128,16]
    p["conv1_w"] = jnp.pad(w(ks[8], (FEAT, 16)), ((0, 128 - FEAT), (0, 0)))
    p["conv1_b"] = b(ks[9], (1, 16))
    # conv2 weight (PyTorch [32,16,5]) stored as [tap, in, out] = [5,16,32]
    p["conv2_w"] = w(ks[10], (5, 16, 32))
    p["conv2_b"] = b(ks[11], (1, 32))
    # linear1 (PyTorch [128,352]) stored as [11,32,128]: w[t,c,:] = W.T[c*11+t,:]
    p["lin1_w"] = w(ks[12], (CONV2_L, 32, 128))
    p["lin1_b"] = b(ks[13], (1, 128))
    # linear2 (PyTorch [1,128]) stored [128,1], zero-padded to [128,128]
    p["lin2_w"] = jnp.pad(w(ks[14], (128, 1)), ((0, 0), (0, 127)))
    p["lin2_b"] = jnp.pad(b(ks[15], (1,)), (0, 127)).reshape(1, 128)
    return p


if __name__ == "__main__":
    key = jax.random.PRNGKey(0)
    k_es, k_ed, k_x, k_p, k2_es, k2_ed, k2_x = jax.random.split(key, 7)

    dim_in = 8
    params = init_params(k_p, dim_in)

    # ---- Test 1: small graphs (< k nodes), A fully resident (single tile) ----
    nodes_per_graph = 24
    num_graphs = 2
    N = nodes_per_graph * num_graphs
    E = 120
    batch = jnp.repeat(jnp.arange(num_graphs, dtype=jnp.int32), nodes_per_graph)
    src = jax.random.randint(k_es, (E,), 0, nodes_per_graph)
    dst = jax.random.randint(k_ed, (E,), 0, nodes_per_graph)
    offset = jnp.where(jnp.arange(E) < E // 2, 0, nodes_per_graph)
    edge_index = jnp.stack([src + offset, dst + offset]).astype(jnp.int32)
    x = jax.random.normal(k_x, (N, dim_in), jnp.float32)
    a_hat = normalized_adjacency(edge_index, N)

    h_cat = jax.block_until_ready(run_gcn(params, x, a_hat))          # (N,128) bf16
    h_ref = gcn_reference(params, x, a_hat)
    gcn_err = float(jnp.max(jnp.abs(
        h_cat.astype(jnp.float32)[:, :FEAT] - h_ref[:, :FEAT])))
    assert gcn_err < 5e-2, f"GCN kernel vs f32 reference mismatch: {gcn_err}"

    h = h_cat[:, :FEAT].astype(jnp.float32)
    pooled = sort_pool(h, batch, num_graphs, K_SORT)                  # (B,30,97)
    out = jax.block_until_ready(fused_head(params, pooled))           # (B,1)
    out_ref = head_reference(params, pooled)
    head_err = float(jnp.max(jnp.abs(out - out_ref)))
    assert head_err < 2e-2, f"head kernel vs f32 reference mismatch: {head_err}"
    assert out.shape == (num_graphs, 1)
    assert bool(jnp.all(jnp.isfinite(out)))
    assert bool(jnp.all((out >= 0.0) & (out <= 1.0)))

    # ---- Test 2: larger graphs with forced tm=128 -> exercises the multi-
    # row-tile streaming path (i>0, per-layer A re-stream, g reuse) ----------
    nodes2, num_graphs2, E2 = 100, 2, 600
    N2 = nodes2 * num_graphs2
    batch2 = jnp.repeat(jnp.arange(num_graphs2, dtype=jnp.int32), nodes2)
    src2 = jax.random.randint(k2_es, (E2,), 0, nodes2)
    dst2 = jax.random.randint(k2_ed, (E2,), 0, nodes2)
    off2 = jnp.where(jnp.arange(E2) < E2 // 2, 0, nodes2)
    ei2 = jnp.stack([src2 + off2, dst2 + off2]).astype(jnp.int32)
    x2 = jax.random.normal(k2_x, (N2, dim_in), jnp.float32)
    a2 = normalized_adjacency(ei2, N2)

    h2 = jax.block_until_ready(run_gcn(params, x2, a2, force_tm=128))
    h2_ref = gcn_reference(params, x2, a2)
    gcn2_err = float(jnp.max(jnp.abs(
        h2.astype(jnp.float32)[:, :FEAT] - h2_ref[:, :FEAT])))
    assert gcn2_err < 5e-2, f"GCN (streamed path) mismatch: {gcn2_err}"

    out2 = jax.block_until_ready(dgcnn_forward(params, x2, a2, batch2, num_graphs2))
    assert out2.shape == (num_graphs2, 1)
    assert bool(jnp.all(jnp.isfinite(out2)))
    assert bool(jnp.all((out2 >= 0.0) & (out2 <= 1.0)))

    print("KERNEL_OK")
</pallas_src>

<mosaic_0001>
module attributes {stable_mosaic.version = 11 : i64} {
  func.func @fused_gcn_kernel(%arg0: i32, %arg1: i32, %arg2: memref<128x128xbf16, #tpu.memory_space<vmem>>, %arg3: memref<128x8xbf16, #tpu.memory_space<vmem>>, %arg4: memref<8x32xbf16, #tpu.memory_space<vmem>>, %arg5: memref<3x32x32xbf16, #tpu.memory_space<vmem>>, %arg6: memref<4x32xf32, #tpu.memory_space<vmem>>, %arg7: memref<128x128xbf16, #tpu.memory_space<vmem>>, %arg8: memref<128x32xbf16, #tpu.memory_space<vmem>>) attributes {dimension_semantics = [#tpu.dimension_semantics<arbitrary>, #tpu.dimension_semantics<arbitrary>], iteration_bounds = array<i64: 4, 1>, scalar_prefetch = 0 : i64, scratch_operands = 1 : i64, tpu.core_type = #tpu.core_type<tc>, window_params = [{transform_indices = @transform_0, window_bounds = array<i64: 128, 128>}, {pipeline_mode = #tpu.pipeline_mode<synchronous>, transform_indices = @transform_1, window_bounds = array<i64: 128, 8>}, {pipeline_mode = #tpu.pipeline_mode<synchronous>, transform_indices = @transform_2, window_bounds = array<i64: 8, 32>}, {pipeline_mode = #tpu.pipeline_mode<synchronous>, transform_indices = @transform_3, window_bounds = array<i64: 3, 32, 32>}, {pipeline_mode = #tpu.pipeline_mode<synchronous>, transform_indices = @transform_4, window_bounds = array<i64: 4, 32>}, {pipeline_mode = #tpu.pipeline_mode<synchronous>, transform_indices = @transform_5, window_bounds = array<i64: 128, 128>}]} {
    %c0_i32 = arith.constant 0 : i32
    %0 = arith.cmpi eq, %arg1, %c0_i32 : i32
    %1 = arith.extui %0 : i1 to i32
    %c0_i32_0 = arith.constant 0 : i32
    %2 = arith.cmpi ne, %1, %c0_i32_0 : i32
    scf.if %2 {
      %c0_i32_9 = arith.constant 0 : i32
      %20 = arith.cmpi eq, %arg0, %c0_i32_9 : i32
      %21 = arith.extui %20 : i1 to i32
      %c0_i32_10 = arith.constant 0 : i32
      %22 = arith.cmpi ne, %21, %c0_i32_10 : i32
      scf.if %22 {
        %c0_17 = arith.constant 0 : index
        %c0_18 = arith.constant 0 : index
        %32 = vector.load %arg3[%c0_17, %c0_18] : memref<128x8xbf16, #tpu.memory_space<vmem>>, vector<128x8xbf16>
        %c0_19 = arith.constant 0 : index
        %c0_20 = arith.constant 0 : index
        %33 = vector.load %arg4[%c0_19, %c0_20] : memref<8x32xbf16, #tpu.memory_space<vmem>>, vector<8x32xbf16>
        %cst_21 = arith.constant dense<0.000000e+00> : vector<128x32xf32>
        %34 = tpu.matmul %32, %33, %cst_21 {dimension_numbers = #tpu.dot_dimension_numbers<[1], [0], [0], [1], [0, 0, 1, 1], [], []>} : vector<128x8xbf16>, vector<8x32xbf16>, vector<128x32xf32> -> vector<128x32xf32>
        %35 = arith.truncf %34 : vector<128x32xf32> to vector<128x32xbf16>
        %c0_22 = arith.constant 0 : index
        %c0_23 = arith.constant 0 : index
        %36 = vector.load %arg8[%c0_22, %c0_23] : memref<128x32xbf16, #tpu.memory_space<vmem>>, vector<128x32xbf16>
        tpu.vector_store %arg8[%c0_22, %c0_23], %35 {strides = array<i32>} : memref<128x32xbf16, #tpu.memory_space<vmem>>, vector<128x32xbf16>,
      } else {
      }
      %c1_i32_11 = arith.constant 1 : i32
      %23 = arith.cmpi eq, %arg0, %c1_i32_11 : i32
      %24 = arith.extui %23 : i1 to i32
      %c0_i32_12 = arith.constant 0 : i32
      %25 = arith.cmpi ne, %24, %c0_i32_12 : i32
      scf.if %25 {
        %c0_17 = arith.constant 0 : index
        %c0_18 = arith.constant 0 : index
        %32 = vector.load %arg7[%c0_17, %c0_18] : memref<128x128xbf16, #tpu.memory_space<vmem>>, vector<128x32xbf16>
        %c0_19 = arith.constant 0 : index
        %c0_20 = arith.constant 0 : index
        %c0_21 = arith.constant 0 : index
        %33 = vector.load %arg5[%c0_19, %c0_20, %c0_21] : memref<3x32x32xbf16, #tpu.memory_space<vmem>>, vector<1x32x32xbf16>
        %34 = vector.shape_cast %33 : vector<1x32x32xbf16> to vector<32x32xbf16>
        %cst_22 = arith.constant dense<0.000000e+00> : vector<128x32xf32>
        %35 = tpu.matmul %32, %34, %cst_22 {dimension_numbers = #tpu.dot_dimension_numbers<[1], [0], [0], [1], [0, 0, 1, 1], [], []>} : vector<128x32xbf16>, vector<32x32xbf16>, vector<128x32xf32> -> vector<128x32xf32>
        %36 = arith.truncf %35 : vector<128x32xf32> to vector<128x32xbf16>
        %c0_23 = arith.constant 0 : index
        %c0_24 = arith.constant 0 : index
        %37 = vector.load %arg8[%c0_23, %c0_24] : memref<128x32xbf16, #tpu.memory_space<vmem>>, vector<128x32xbf16>
        tpu.vector_store %arg8[%c0_23, %c0_24], %36 {strides = array<i32>} : memref<128x32xbf16, #tpu.memory_space<vmem>>, vector<128x32xbf16>,
      } else {
      }
      %c2_i32_13 = arith.constant 2 : i32
      %26 = arith.cmpi eq, %arg0, %c2_i32_13 : i32
      %27 = arith.extui %26 : i1 to i32
      %c0_i32_14 = arith.constant 0 : i32
      %28 = arith.cmpi ne, %27, %c0_i32_14 : i32
      scf.if %28 {
        %c0_17 = arith.constant 0 : index
        %c32 = arith.constant 32 : index
        %32 = vector.load %arg7[%c0_17, %c32] : memref<128x128xbf16, #tpu.memory_space<vmem>>, vector<128x32xbf16>
        %c1 = arith.constant 1 : index
        %c0_18 = arith.constant 0 : index
        %c0_19 = arith.constant 0 : index
        %33 = vector.load %arg5[%c1, %c0_18, %c0_19] : memref<3x32x32xbf16, #tpu.memory_space<vmem>>, vector<1x32x32xbf16>
        %34 = vector.shape_cast %33 : vector<1x32x32xbf16> to vector<32x32xbf16>
        %cst_20 = arith.constant dense<0.000000e+00> : vector<128x32xf32>
        %35 = tpu.matmul %32, %34, %cst_20 {dimension_numbers = #tpu.dot_dimension_numbers<[1], [0], [0], [1], [0, 0, 1, 1], [], []>} : vector<128x32xbf16>, vector<32x32xbf16>, vector<128x32xf32> -> vector<128x32xf32>
        %36 = arith.truncf %35 : vector<128x32xf32> to vector<128x32xbf16>
        %c0_21 = arith.constant 0 : index
        %c0_22 = arith.constant 0 : index
        %37 = vector.load %arg8[%c0_21, %c0_22] : memref<128x32xbf16, #tpu.memory_space<vmem>>, vector<128x32xbf16>
        tpu.vector_store %arg8[%c0_21, %c0_22], %36 {strides = array<i32>} : memref<128x32xbf16, #tpu.memory_space<vmem>>, vector<128x32xbf16>,
      } else {
      }
      %c3_i32_15 = arith.constant 3 : i32
      %29 = arith.cmpi eq, %arg0, %c3_i32_15 : i32
      %30 = arith.extui %29 : i1 to i32
      %c0_i32_16 = arith.constant 0 : i32
      %31 = arith.cmpi ne, %30, %c0_i32_16 : i32
      scf.if %31 {
        %c0_17 = arith.constant 0 : index
        %c64 = arith.constant 64 : index
        %32 = vector.load %arg7[%c0_17, %c64] : memref<128x128xbf16, #tpu.memory_space<vmem>>, vector<128x32xbf16>
        %c2 = arith.constant 2 : index
        %c0_18 = arith.constant 0 : index
        %c0_19 = arith.constant 0 : index
        %33 = vector.load %arg5[%c2, %c0_18, %c0_19] : memref<3x32x32xbf16, #tpu.memory_space<vmem>>, vector<1x32x32xbf16>
        %34 = vector.shape_cast %33 : vector<1x32x32xbf16> to vector<32x32xbf16>
        %cst_20 = arith.constant dense<0.000000e+00> : vector<128x32xf32>
        %35 = tpu.matmul %32, %34, %cst_20 {dimension_numbers = #tpu.dot_dimension_numbers<[1], [0], [0], [1], [0, 0, 1, 1], [], []>} : vector<128x32xbf16>, vector<32x32xbf16>, vector<128x32xf32> -> vector<128x32xf32>
        %36 = arith.truncf %35 : vector<128x32xf32> to vector<128x32xbf16>
        %c0_21 = arith.constant 0 : index
        %c0_22 = arith.constant 0 : index
        %37 = vector.load %arg8[%c0_21, %c0_22] : memref<128x32xbf16, #tpu.memory_space<vmem>>, vector<128x32xbf16>
        tpu.vector_store %arg8[%c0_21, %c0_22], %36 {strides = array<i32>} : memref<128x32xbf16, #tpu.memory_space<vmem>>, vector<128x32xbf16>,
      } else {
      }
    } else {
    }
    %c0 = arith.constant 0 : index
    %c0_1 = arith.constant 0 : index
    %3 = vector.load %arg2[%c0, %c0_1] : memref<128x128xbf16, #tpu.memory_space<vmem>>, vector<128x128xbf16>
    %c0_2 = arith.constant 0 : index
    %c0_3 = arith.constant 0 : index
    %4 = vector.load %arg8[%c0_2, %c0_3] : memref<128x32xbf16, #tpu.memory_space<vmem>>, vector<128x32xbf16>
    %cst = arith.constant dense<0.000000e+00> : vector<128x32xf32>
    %5 = tpu.matmul %3, %4, %cst {dimension_numbers = #tpu.dot_dimension_numbers<[1], [0], [0], [1], [0, 0, 1, 1], [], []>} : vector<128x128xbf16>, vector<128x32xbf16>, vector<128x32xf32> -> vector<128x32xf32>
    %c128_i32 = arith.constant 128 : i32
    %6 = arith.muli %arg1, %c128_i32 : i32
    %7 = tpu.assume_multiple %6, 128 : i32
    %c0_i32_4 = arith.constant 0 : i32
    %8 = arith.cmpi eq, %arg0, %c0_i32_4 : i32
    %9 = arith.extui %8 : i1 to i32
    %c0_i32_5 = arith.constant 0 : i32
    %10 = arith.cmpi ne, %9, %c0_i32_5 : i32
    scf.if %10 {
      %c0_9 = arith.constant 0 : index
      %c0_10 = arith.constant 0 : index
      %20 = vector.load %arg6[%c0_9, %c0_10] : memref<4x32xf32, #tpu.memory_space<vmem>>, vector<1x32xf32>
      %21 = vector.broadcast %20 : vector<1x32xf32> to vector<128x32xf32>
      %22 = arith.addf %5, %21 : vector<128x32xf32>
      %23 = math.tanh %22 : vector<128x32xf32>
      %24 = arith.truncf %23 : vector<128x32xf32> to vector<128x32xbf16>
      %25 = arith.index_cast %7 : i32 to index
      %c0_11 = arith.constant 0 : index
      %26 = vector.load %arg7[%25, %c0_11] : memref<128x128xbf16, #tpu.memory_space<vmem>>, vector<128x32xbf16>
      tpu.vector_store %arg7[%25, %c0_11], %24 {strides = array<i32>} : memref<128x128xbf16, #tpu.memory_space<vmem>>, vector<128x32xbf16>,
    } else {
    }
    %c1_i32 = arith.constant 1 : i32
    %11 = arith.cmpi eq, %arg0, %c1_i32 : i32
    %12 = arith.extui %11 : i1 to i32
    %c0_i32_6 = arith.constant 0 : i32
    %13 = arith.cmpi ne, %12, %c0_i32_6 : i32
    scf.if %13 {
      %c1 = arith.constant 1 : index
      %c0_9 = arith.constant 0 : index
      %20 = vector.load %arg6[%c1, %c0_9] : memref<4x32xf32, #tpu.memory_space<vmem>>, vector<1x32xf32>
      %21 = vector.broadcast %20 : vector<1x32xf32> to vector<128x32xf32>
      %22 = arith.addf %5, %21 : vector<128x32xf32>
      %23 = math.tanh %22 : vector<128x32xf32>
      %24 = arith.truncf %23 : vector<128x32xf32> to vector<128x32xbf16>
      %25 = arith.index_cast %7 : i32 to index
      %c32 = arith.constant 32 : index
      %26 = vector.load %arg7[%25, %c32] : memref<128x128xbf16, #tpu.memory_space<vmem>>, vector<128x32xbf16>
      tpu.vector_store %arg7[%25, %c32], %24 {strides = array<i32>} : memref<128x128xbf16, #tpu.memory_space<vmem>>, vector<128x32xbf16>,
    } else {
    }
    %c2_i32 = arith.constant 2 : i32
    %14 = arith.cmpi eq, %arg0, %c2_i32 : i32
    %15 = arith.extui %14 : i1 to i32
    %c0_i32_7 = arith.constant 0 : i32
    %16 = arith.cmpi ne, %15, %c0_i32_7 : i32
    scf.if %16 {
      %c2 = arith.constant 2 : index
      %c0_9 = arith.constant 0 : index
      %20 = vector.load %arg6[%c2, %c0_9] : memref<4x32xf32, #tpu.memory_space<vmem>>, vector<1x32xf32>
      %21 = vector.broadcast %20 : vector<1x32xf32> to vector<128x32xf32>
      %22 = arith.addf %5, %21 : vector<128x32xf32>
      %23 = math.tanh %22 : vector<128x32xf32>
      %24 = arith.truncf %23 : vector<128x32xf32> to vector<128x32xbf16>
      %25 = arith.index_cast %7 : i32 to index
      %c64 = arith.constant 64 : index
      %26 = vector.load %arg7[%25, %c64] : memref<128x128xbf16, #tpu.memory_space<vmem>>, vector<128x32xbf16>
      tpu.vector_store %arg7[%25, %c64], %24 {strides = array<i32>} : memref<128x128xbf16, #tpu.memory_space<vmem>>, vector<128x32xbf16>,
    } else {
    }
    %c3_i32 = arith.constant 3 : i32
    %17 = arith.cmpi eq, %arg0, %c3_i32 : i32
    %18 = arith.extui %17 : i1 to i32
    %c0_i32_8 = arith.constant 0 : i32
    %19 = arith.cmpi ne, %18, %c0_i32_8 : i32
    scf.if %19 {
      %c3 = arith.constant 3 : index
      %c0_9 = arith.constant 0 : index
      %20 = vector.load %arg6[%c3, %c0_9] : memref<4x32xf32, #tpu.memory_space<vmem>>, vector<1x32xf32>
      %21 = vector.broadcast %20 : vector<1x32xf32> to vector<128x32xf32>
      %22 = arith.addf %5, %21 : vector<128x32xf32>
      %23 = math.tanh %22 : vector<128x32xf32>
      %24 = arith.truncf %23 : vector<128x32xf32> to vector<128x32xbf16>
      %25 = arith.index_cast %7 : i32 to index
      %c96 = arith.constant 96 : index
      %26 = vector.load %arg7[%25, %c96] : memref<128x128xbf16, #tpu.memory_space<vmem>>, vector<128x32xbf16>
      tpu.vector_store %arg7[%25, %c96], %24 {strides = array<i32>} : memref<128x128xbf16, #tpu.memory_space<vmem>>, vector<128x32xbf16>,
    } else {
    }
    return
  }
  func.func @transform_0(%arg0: i32, %arg1: i32) -> (i32, i32) {
    %c0_i32 = arith.constant 0 : i32
    %c0_i32_0 = arith.constant 0 : i32
    return %arg1, %c0_i32 : i32, i32
  }
  func.func @transform_1(%arg0: i32, %arg1: i32) -> (i32, i32) {
    %c0_i32 = arith.constant 0 : i32
    %c0_i32_0 = arith.constant 0 : i32
    %c0_i32_1 = arith.constant 0 : i32
    return %c0_i32, %c0_i32_0 : i32, i32
  }
  func.func @transform_2(%arg0: i32, %arg1: i32) -> (i32, i32) {
    %c0_i32 = arith.constant 0 : i32
    %c0_i32_0 = arith.constant 0 : i32
    %c0_i32_1 = arith.constant 0 : i32
    return %c0_i32, %c0_i32_0 : i32, i32
  }
  func.func @transform_3(%arg0: i32, %arg1: i32) -> (i32, i32, i32) {
    %c0_i32 = arith.constant 0 : i32
    %c0_i32_0 = arith.constant 0 : i32
    %c0_i32_1 = arith.constant 0 : i32
    %c0_i32_2 = arith.constant 0 : i32
    return %c0_i32, %c0_i32_0, %c0_i32_1 : i32, i32, i32
  }
  func.func @transform_4(%arg0: i32, %arg1: i32) -> (i32, i32) {
    %c0_i32 = arith.constant 0 : i32
    %c0_i32_0 = arith.constant 0 : i32
    %c0_i32_1 = arith.constant 0 : i32
    return %c0_i32, %c0_i32_0 : i32, i32
  }
  func.func @transform_5(%arg0: i32, %arg1: i32) -> (i32, i32) {
    %c0_i32 = arith.constant 0 : i32
    %c0_i32_0 = arith.constant 0 : i32
    %c0_i32_1 = arith.constant 0 : i32
    return %c0_i32, %c0_i32_0 : i32, i32
  }
}

</mosaic_0001>

<llo_original>
// kernel: tpu_custom_call.1
$region0: #{tpu_custom_call.1}
  #allocation0 [shape = 'u32[]', space=smem, size = 0x4, offset = 0x4, fixed_abs, tag = 'smem constant byte address 0x4 - core index']
  #allocation1 [shape = 'u32[144,128]{1,0:T(1,128)}', space=vmem, size = 0x12000, scoped, tag = 'internal scratch']
  #allocation2 [shape = 'bf16[128,32]{1,0:T(16,128)(2,1)}', space=vmem, size = 0x8000, scoped, tag = 'scratch operand']
  %s0 = inlined_call_operand.hbm [shape: bf16[128,128], index: 0, kind: input, shape index: {}]
  %s1 = inlined_call_operand.hbm [shape: bf16[128,8], index: 1, kind: input, shape index: {}]
  %s2 = inlined_call_operand.hbm [shape: bf16[8,32], index: 2, kind: input, shape index: {}]
  %s3 = inlined_call_operand.hbm [shape: bf16[3,32,32], index: 3, kind: input, shape index: {}]
  %s4 = inlined_call_operand.hbm [shape: f32[4,32], index: 4, kind: input, shape index: {}]
  %s5 = inlined_call_operand.hbm [shape: bf16[128,128], index: 5, kind: output, shape index: {}]
  %s6 = sld [smem:[#allocation0]]
  $region109: #{tpu_custom_call.1} parent=0
    _
  %s8 = ssub.s32 1, %s6
  %s9 = scalar_select 0, %s8, %s6
  $region1: #{tpu_custom_call.1} parent=0
    #allocation3 [shape = 'u8[32768]{0}', space=vmem, size = 0x8000, scoped, tag = 'input window, operand 0, single buffered']
    #allocation4 [shape = 's32[2]{0}', space=sflag, size = 0x8, scoped, tag = 'scoped memory for tpu_custom_call.1']
    #allocation5 [shape = 's32[2]{0}', space=sflag, size = 0x8, scoped, tag = 'scoped memory for tpu_custom_call.1']
    #allocation6 [shape = 'u8[32768]{0}', space=vmem, size = 0x8000, scoped, tag = 'input window, operand 1, single buffered']
    #allocation7 [shape = 's32[1]{0}', space=sflag, size = 0x4, scoped, tag = 'scoped memory for tpu_custom_call.1']
    #allocation8 [shape = 'u8[2048]{0}', space=vmem, size = 0x800, scoped, tag = 'input window, operand 2, single buffered']
    #allocation9 [shape = 'u8[24576]{0}', space=vmem, size = 0x6000, scoped, tag = 'input window, operand 3, single buffered']
    #allocation10 [shape = 's32[1]{0}', space=sflag, size = 0x4, scoped, tag = 'scoped memory for tpu_custom_call.1']
    #allocation11 [shape = 'u8[2048]{0}', space=vmem, size = 0x800, scoped, tag = 'input window, operand 4, single buffered']
    #allocation12 [shape = 'u8[32768]{0}', space=vmem, size = 0x8000, scoped, tag = 'output window, operand 0, single buffered']
    %10 = vsyncpa [#allocation4], 0
    %11 = vsyncpa [#allocation7], 0
    %12 = vsyncpa [#allocation10], 0
    %13 = vsyncpa [#allocation5], 0
    loop: start=0, step=1, limit=6
    $region2: #{tpu_custom_call.1} parent=1 // loop_pre_header
      _
    $region3: #{tpu_custom_call.1} parent=1 // loop_header
      %s15 = sphi 0, %s19
      %p16 = scmp.ge.s32.totalorder %s15, 6
      %s22 = sphi 0, %s34
      %s23 = sphi 0, %s30
      %s24 = sphi 0, %s22
      %s25 = sphi 0, %s23
      %s26 = sphi 0, %s24
      %s27 = sphi 0, %s25
      %s37 = sphi 0, %s39
      %s40 = sphi 0, %s37
      %s41 = sphi 0, %s40
      %s57 = sphi 0, %s41
      %s61 = sphi 0, %s61
      %s63 = sphi 0, %s61
      %s64 = sphi 0, %s63
      %s78 = sphi 0, %s64
      %s82 = sphi 0, %s82
      %s84 = sphi 0, %s82
      %s85 = sphi 0, %s84
      %s99 = sphi 0, %s85
      %s103 = sphi 0, %s103
      %s105 = sphi 0, %s103
      %s106 = sphi 0, %s105
      %s120 = sphi 0, %s106
      %s124 = sphi 0, %s124
      %s126 = sphi 0, %s124
      %s127 = sphi 0, %s126
      %s141 = sphi 0, %s127
      %s145 = sphi 0, %s145
      %s147 = sphi 0, %s145
      %s148 = sphi 0, %s147
      %s162 = sphi 0, %s148
    $region4: #{tpu_custom_call.1} parent=1 // loop_header_branch
      %18 = sbr.rel (%p16) target = $region8
    $region5: #{tpu_custom_call.1} parent=1 // loop_body
      %s20 = ssub.s32 %s15, 1
      %s21 = ssub.s32 %s15, 2
      %s28 = sadd.s32 1, %s23
      %p29 = scmp.ge.s32.totalorder %s28, 1
      %s30 = scalar_select %p29, 0, %s28
      %s31 = sadd.s32 1, %s22
      %s32 = scalar_select %p29, %s31, %s22
      %p33 = scmp.ge.s32.totalorder %s32, 4
      %s34 = scalar_select %p33, 0, %s32
      %s35 = ssub.s32 %s23, %s30
      %p36 = scmp.eq.s32.totalorder %s35, 0
      %s38 = sadd.s32 %s37, 1
      %s39 = scalar_select %p36, %s37, %s38
      %p42 = pneg %p36
      %p43 = scmp.eq.s32.totalorder %s15, 3
      %p44 = por %p42, %p43
      %p45 = scmp.ne.s32.totalorder %s37, %s40
      %p46 = scmp.eq.s32.totalorder %s15, 0
      %p47 = por %p45, %p46
      %p48 = scmp.ne.s32.totalorder %s37, %s40
      %p49 = scmp.eq.s32.totalorder %s20, 3
      %p50 = por %p48, %p49
      %p51 = scmp.ne.s32.totalorder %s40, %s41
      %p52 = scmp.eq.s32.totalorder %s20, 0
      %p53 = por %p51, %p52
      %p54 = scmp.ne.s32.totalorder %s40, %s41
      %p55 = scmp.eq.s32.totalorder %s21, 3
      %p56 = por %p54, %p55
      %p58 = scmp.ne.s32.totalorder %s41, %s57
      %p59 = scmp.eq.s32.totalorder %s21, 0
      %p60 = por %p58, %p59
      %s62 = sadd.s32 %s61, 1
      %p65 = scmp.eq.s32.totalorder %s15, 3
      %p66 = scmp.ne.s32.totalorder %s61, %s63
      %p67 = scmp.eq.s32.totalorder %s15, 0
      %p68 = por %p66, %p67
      %p69 = scmp.ne.s32.totalorder %s61, %s63
      %p70 = scmp.eq.s32.totalorder %s20, 3
      %p71 = por %p69, %p70
      %p72 = scmp.ne.s32.totalorder %s63, %s64
      %p73 = scmp.eq.s32.totalorder %s20, 0
      %p74 = por %p72, %p73
      %p75 = scmp.ne.s32.totalorder %s63, %s64
      %p76 = scmp.eq.s32.totalorder %s21, 3
      %p77 = por %p75, %p76
      %p79 = scmp.ne.s32.totalorder %s64, %s78
      %p80 = scmp.eq.s32.totalorder %s21, 0
      %p81 = por %p79, %p80
      %s83 = sadd.s32 %s82, 1
      %p86 = scmp.eq.s32.totalorder %s15, 3
      %p87 = scmp.ne.s32.totalorder %s82, %s84
      %p88 = scmp.eq.s32.totalorder %s15, 0
      %p89 = por %p87, %p88
      %p90 = scmp.ne.s32.totalorder %s82, %s84
      %p91 = scmp.eq.s32.totalorder %s20, 3
      %p92 = por %p90, %p91
      %p93 = scmp.ne.s32.totalorder %s84, %s85
      %p94 = scmp.eq.s32.totalorder %s20, 0
      %p95 = por %p93, %p94
      %p96 = scmp.ne.s32.totalorder %s84, %s85
      %p97 = scmp.eq.s32.totalorder %s21, 3
      %p98 = por %p96, %p97
      %p100 = scmp.ne.s32.totalorder %s85, %s99
      %p101 = scmp.eq.s32.totalorder %s21, 0
      %p102 = por %p100, %p101
      %s104 = sadd.s32 %s103, 1
      %p107 = scmp.eq.s32.totalorder %s15, 3
      %p108 = scmp.ne.s32.totalorder %s103, %s105
      %p109 = scmp.eq.s32.totalorder %s15, 0
      %p110 = por %p108, %p109
      %p111 = scmp.ne.s32.totalorder %s103, %s105
      %p112 = scmp.eq.s32.totalorder %s20, 3
      %p113 = por %p111, %p112
      %p114 = scmp.ne.s32.totalorder %s105, %s106
      %p115 = scmp.eq.s32.totalorder %s20, 0
      %p116 = por %p114, %p115
      %p117 = scmp.ne.s32.totalorder %s105, %s106
      %p118 = scmp.eq.s32.totalorder %s21, 3
      %p119 = por %p117, %p118
      %p121 = scmp.ne.s32.totalorder %s106, %s120
      %p122 = scmp.eq.s32.totalorder %s21, 0
      %p123 = por %p121, %p122
      %s125 = sadd.s32 %s124, 1
      %p128 = scmp.eq.s32.totalorder %s15, 3
      %p129 = scmp.ne.s32.totalorder %s124, %s126
      %p130 = scmp.eq.s32.totalorder %s15, 0
      %p131 = por %p129, %p130
      %p132 = scmp.ne.s32.totalorder %s124, %s126
      %p133 = scmp.eq.s32.totalorder %s20, 3
      %p134 = por %p132, %p133
      %p135 = scmp.ne.s32.totalorder %s126, %s127
      %p136 = scmp.eq.s32.totalorder %s20, 0
      %p137 = por %p135, %p136
      %p138 = scmp.ne.s32.totalorder %s126, %s127
      %p139 = scmp.eq.s32.totalorder %s21, 3
      %p140 = por %p138, %p139
      %p142 = scmp.ne.s32.totalorder %s127, %s141
      %p143 = scmp.eq.s32.totalorder %s21, 0
      %p144 = por %p142, %p143
      %s146 = sadd.s32 %s145, 1
      %p149 = scmp.eq.s32.totalorder %s15, 3
      %p150 = scmp.ne.s32.totalorder %s145, %s147
      %p151 = scmp.eq.s32.totalorder %s15, 0
      %p152 = por %p150, %p151
      %p153 = scmp.ne.s32.totalorder %s145, %s147
      %p154 = scmp.eq.s32.totalorder %s20, 3
      %p155 = por %p153, %p154
      %p156 = scmp.ne.s32.totalorder %s147, %s148
      %p157 = scmp.eq.s32.totalorder %s20, 0
      %p158 = por %p156, %p157
      %p159 = scmp.ne.s32.totalorder %s147, %s148
      %p160 = scmp.eq.s32.totalorder %s21, 3
      %p161 = por %p159, %p160
      %p163 = scmp.ne.s32.totalorder %s148, %s162
      %p164 = scmp.eq.s32.totalorder %s21, 0
      %p165 = por %p163, %p164
      %p166 = scmp.le.s32.totalorder 1, %s15
      %p167 = scmp.lt.s32.totalorder %s15, 5
      %p168 = pnand %p166, %p167
      %p169 = pneg %p168
      // Predicated region
      $region9: #{tpu_custom_call.1} parent=5 // pred_check
        _
      $region10: #{tpu_custom_call.1} parent=5 // pred_check_branch
        %171 = sbr.rel (%p168) target = $region12
      $region11: #{tpu_custom_call.1} parent=5 // pred_region
        %s172 = ssub.s32 %s15, 1
        // Predicated region
        $region13: #{tpu_custom_call.1} parent=11 // pred_check
          %p173 = pneg %p53
        $region14: #{tpu_custom_call.1} parent=11 // pred_check_branch
          %175 = sbr.rel (%p173) target = $region16
        $region15: #{tpu_custom_call.1} parent=11 // pred_region
          %s176 = smul.u32 16, %s25
          %s178 = ssub.s32 1024, 1024
          %179 = vsyncadd [#allocation4], %s178
          %s180 = smul.addr %s176, 64
          %s181 = scalar_lea.hbm %s0, %s180
          %s182 = sshll.u32 [#allocation3], 4
          %s183 = int_to_ptr.vmem [resolvable:$true] %s182
          %188 = dma.hbm_to_vmem [thread:$0]  %s181, 1024, %s183, [#allocation4], 64, 64, 4
        $region16: #{tpu_custom_call.1} parent=11 // pred_fallthru
          _
        // Predicated region
        $region17: #{tpu_custom_call.1} parent=11 // pred_check
          %p189 = pneg %p74
        $region18: #{tpu_custom_call.1} parent=11 // pred_check_branch
          %191 = sbr.rel (%p189) target = $region20
        $region19: #{tpu_custom_call.1} parent=11 // pred_region
          %s193 = ssub.s32 1024, 1024
          %194 = vsyncadd [#allocation7], %s193
          %s195 = sshll.u32 [#allocation6], 4
          %s196 = int_to_ptr.vmem [resolvable:$true] %s195
          %201 = dma.hbm_to_vmem [thread:$0]  %s1, 1024, %s196, [#allocation7], 64, 64, 4
        $region20: #{tpu_custom_call.1} parent=11 // pred_fallthru
          _
        // Predicated region
        $region21: #{tpu_custom_call.1} parent=11 // pred_check
          %p202 = pneg %p95
        $region22: #{tpu_custom_call.1} parent=11 // pred_check_branch
          %204 = sbr.rel (%p202) target = $region24
        $region23: #{tpu_custom_call.1} parent=11 // pred_region
          %s206 = ssub.s32 64, 64
          %207 = vsyncadd [#allocation7], %s206
          %s209 = sshll.u32 [#allocation8], 4
          %s210 = int_to_ptr.vmem [resolvable:$true] %s209
          %212 = dma.hbm_to_vmem [thread:$0]  %s2, 64, %s210, [#allocation7]
        $region24: #{tpu_custom_call.1} parent=11 // pred_fallthru
          _
        // Predicated region
        $region25: #{tpu_custom_call.1} parent=11 // pred_check
          %p213 = pneg %p116
        $region26: #{tpu_custom_call.1} parent=11 // pred_check_branch
          %215 = sbr.rel (%p213) target = $region28
        $region27: #{tpu_custom_call.1} parent=11 // pred_region
          %s217 = ssub.s32 768, 768
          %218 = vsyncadd [#allocation10], %s217
          %s219 = sshll.u32 [#allocation9], 4
          %s220 = int_to_ptr.vmem [resolvable:$true] %s219
          %225 = dma.hbm_to_vmem [thread:$0]  %s3, 768, %s220, [#allocation10], 64, 64, 4
        $region28: #{tpu_custom_call.1} parent=11 // pred_fallthru
          _
        // Predicated region
        $region29: #{tpu_custom_call.1} parent=11 // pred_check
          %p226 = pneg %p137
        $region30: #{tpu_custom_call.1} parent=11 // pred_check_branch
          %228 = sbr.rel (%p226) target = $region32
        $region31: #{tpu_custom_call.1} parent=11 // pred_region
          %s230 = ssub.s32 64, 64
          %231 = vsyncadd [#allocation10], %s230
          %s233 = sshll.u32 [#allocation11], 4
          %s234 = int_to_ptr.vmem [resolvable:$true] %s233
          %236 = dma.hbm_to_vmem [thread:$0]  %s4, 64, %s234, [#allocation10]
        $region32: #{tpu_custom_call.1} parent=11 // pred_fallthru
          _
      $region12: #{tpu_custom_call.1} parent=5 // pred_fallthru
        _
      %p237 = scmp.lt.s32.totalorder %s15, 4
      // Predicated region
      $region33: #{tpu_custom_call.1} parent=5 // pred_check
        %p238 = pneg %p237
      $region34: #{tpu_custom_call.1} parent=5 // pred_check_branch
        %240 = sbr.rel (%p238) target = $region36
      $region35: #{tpu_custom_call.1} parent=5 // pred_region
        _
      $region36: #{tpu_custom_call.1} parent=5 // pred_fallthru
        _
      %p241 = scmp.le.s32.totalorder 1, %s15
      %p242 = scmp.lt.s32.totalorder %s15, 5
      %p243 = pnand %p241, %p242
      %p244 = pneg %p243
      // Predicated region
      $region37: #{tpu_custom_call.1} parent=5 // pred_check
        _
      $region38: #{tpu_custom_call.1} parent=5 // pred_check_branch
        %246 = sbr.rel (%p243) target = $region40
      $region39: #{tpu_custom_call.1} parent=5 // pred_region
        %s247 = ssub.s32 %s15, 1
        // Predicated region
        $region41: #{tpu_custom_call.1} parent=39 // pred_check
          %p248 = pneg %p53
        $region42: #{tpu_custom_call.1} parent=39 // pred_check_branch
          %250 = sbr.rel (%p248) target = $region44
        $region43: #{tpu_custom_call.1} parent=39 // pred_region
          %251 = dma.done [#allocation4], 1024
        $region44: #{tpu_custom_call.1} parent=39 // pred_fallthru
          _
        // Predicated region
        $region45: #{tpu_custom_call.1} parent=39 // pred_check
          %p252 = pneg %p74
        $region46: #{tpu_custom_call.1} parent=39 // pred_check_branch
          %254 = sbr.rel (%p252) target = $region48
        $region47: #{tpu_custom_call.1} parent=39 // pred_region
          %255 = dma.done [#allocation7], 1024
        $region48: #{tpu_custom_call.1} parent=39 // pred_fallthru
          _
        // Predicated region
        $region49: #{tpu_custom_call.1} parent=39 // pred_check
          %p256 = pneg %p95
        $region50: #{tpu_custom_call.1} parent=39 // pred_check_branch
          %258 = sbr.rel (%p256) target = $region52
        $region51: #{tpu_custom_call.1} parent=39 // pred_region
          %259 = dma.done [#allocation7], 64
        $region52: #{tpu_custom_call.1} parent=39 // pred_fallthru
          _
        // Predicated region
        $region53: #{tpu_custom_call.1} parent=39 // pred_check
          %p260 = pneg %p116
        $region54: #{tpu_custom_call.1} parent=39 // pred_check_branch
          %262 = sbr.rel (%p260) target = $region56
        $region55: #{tpu_custom_call.1} parent=39 // pred_region
          %263 = dma.done [#allocation10], 768
        $region56: #{tpu_custom_call.1} parent=39 // pred_fallthru
          _
        // Predicated region
        $region57: #{tpu_custom_call.1} parent=39 // pred_check
          %p264 = pneg %p137
        $region58: #{tpu_custom_call.1} parent=39 // pred_check_branch
          %266 = sbr.rel (%p264) target = $region60
        $region59: #{tpu_custom_call.1} parent=39 // pred_region
          %267 = dma.done [#allocation10], 64
        $region60: #{tpu_custom_call.1} parent=39 // pred_fallthru
          _
        %p268 = pneg %p53
        %p269 = pneg %p50
        %p270 = pneg %p74
        %p271 = pneg %p71
        %p272 = pneg %p95
        %p273 = pneg %p92
        %p274 = pneg %p116
        %p275 = pneg %p113
        %p276 = pneg %p137
        %p277 = pneg %p134
        %p278 = pneg %p158
        %p279 = pneg %p155
        %s280 = smul.u32 16, %s25
        %p282 = scmp.eq.s32.totalorder %s25, 0
        // Predicated region
        $region61: #{tpu_custom_call.1} parent=39 // pred_check
          %p283 = pneg %p282
        $region62: #{tpu_custom_call.1} parent=39 // pred_check_branch
          %285 = sbr.rel (%p283) target = $region64
        $region63: #{tpu_custom_call.1} parent=39 // pred_region
          %p286 = scmp.eq.s32.totalorder %s24, 0
          // Predicated region
          $region65: #{tpu_custom_call.1} parent=63 // pred_check
            %p287 = pneg %p286
          $region66: #{tpu_custom_call.1} parent=63 // pred_check_branch
            %289 = sbr.rel (%p287) target = $region68
          $region67: #{tpu_custom_call.1} parent=63 // pred_region
            %v290 = vld [vmem:[#allocation6] sm:$0xf]
            %v291 = vld [vmem:[#allocation6 + $0x4] sm:$0xf]
            %v292 = vld [vmem:[#allocation6 + $0x8] sm:$0xf]
            %v293 = vld [vmem:[#allocation6 + $0xc] sm:$0xf]
            %v294 = vld [vmem:[#allocation6 + $0x10] sm:$0xf]
            %v295 = vld [vmem:[#allocation6 + $0x14] sm:$0xf]
            %v296 = vld [vmem:[#allocation6 + $0x18] sm:$0xf]
            %v297 = vld [vmem:[#allocation6 + $0x1c] sm:$0xf]
            %v298 = vld [vmem:[#allocation6 + $0x20] sm:$0xf]
            %v299 = vld [vmem:[#allocation6 + $0x24] sm:$0xf]
            %v300 = vld [vmem:[#allocation6 + $0x28] sm:$0xf]
            %v301 = vld [vmem:[#allocation6 + $0x2c] sm:$0xf]
            %v302 = vld [vmem:[#allocation6 + $0x30] sm:$0xf]
            %v303 = vld [vmem:[#allocation6 + $0x34] sm:$0xf]
            %v304 = vld [vmem:[#allocation6 + $0x38] sm:$0xf]
            %v305 = vld [vmem:[#allocation6 + $0x3c] sm:$0xf]
            %v306 = vld [vmem:[#allocation8] sm:$0xf]
            %v323 = vunpack.c.l.b16 %v290
            %v324 = vunpack.c.l.b16 %v291
            %v325 = vunpack.c.l.b16 %v292
            %v326 = vunpack.c.l.b16 %v293
            %v327 = vunpack.c.l.b16 %v294
            %v328 = vunpack.c.l.b16 %v295
            %v329 = vunpack.c.l.b16 %v296
            %v330 = vunpack.c.l.b16 %v297
            %v331 = vunpack.c.l.b16 %v298
            %v332 = vunpack.c.l.b16 %v299
            %v333 = vunpack.c.l.b16 %v300
            %v334 = vunpack.c.l.b16 %v301
            %v335 = vunpack.c.l.b16 %v302
            %v336 = vunpack.c.l.b16 %v303
            %v337 = vunpack.c.l.b16 %v304
            %v338 = vunpack.c.l.b16 %v305
            %v339 = vpack.c.b16 %v324, %v323
            %v340 = vpack.c.b16 %v326, %v325
            %v341 = vpack.c.b16 %v328, %v327
            %v342 = vpack.c.b16 %v330, %v329
            %v343 = vpack.c.b16 %v332, %v331
            %v344 = vpack.c.b16 %v334, %v333
            %v345 = vpack.c.b16 %v336, %v335
            %v346 = vpack.c.b16 %v338, %v337
            %vm347 = vcmask 64512
            %v349 = vsel %vm347, %v339, 0
            %v352 = vsel %vm347, %v340, 0
            %v355 = vsel %vm347, %v341, 0
            %v358 = vsel %vm347, %v342, 0
            %v361 = vsel %vm347, %v343, 0
            %v364 = vsel %vm347, %v344, 0
            %v367 = vsel %vm347, %v345, 0
            %v370 = vsel %vm347, %v346, 0
            %vm372 = vcmask 1043456
            %v374 = vsel %vm372, %v306, 0
            %376 = vmatprep.subr.bf16.mxu0 0
            %377 = vmatpush1.bf16.msra.mxu0 %v374
            %378 = vmatprep.subr.bf16.mxu0 0
            %379 = vmatpush1.bf16.msra.mxu0 0
            %380 = vmatprep.subr.bf16.mxu0 0
            %381 = vmatpush1.bf16.msra.mxu0 0
            %382 = vmatprep.subr.bf16.mxu0 0
            %383 = vmatpush1.bf16.msra.mxu0 0
            %384 = vmatprep.subr.bf16.mxu0 0
            %385 = vmatpush1.bf16.msra.mxu0 0
            %386 = vmatprep.subr.bf16.mxu0 0
            %387 = vmatpush1.bf16.msra.mxu0 0
            %388 = vmatprep.subr.bf16.mxu0 0
            %389 = vmatpush1.bf16.msra.mxu0 0
            %390 = vmatprep.subr.bf16.mxu0 0
            %391 = vmatpush1.bf16.msra.mxu0 0
            %392 = vmatprep.subr.bf16.mxu0 0
            %393 = vmatpush1.bf16.msra.mxu0 0
            %394 = vmatprep.subr.bf16.mxu0 0
            %395 = vmatpush1.bf16.msra.mxu0 0
            %396 = vmatprep.subr.bf16.mxu0 0
            %397 = vmatpush1.bf16.msra.mxu0 0
            %398 = vmatprep.subr.bf16.mxu0 0
            %399 = vmatpush1.bf16.msra.mxu0 0
            %400 = vmatprep.subr.bf16.mxu0 0
            %401 = vmatpush1.bf16.msra.mxu0 0
            %402 = vmatprep.subr.bf16.mxu0 0
            %403 = vmatpush1.bf16.msra.mxu0 0
            %404 = vmatprep.subr.bf16.mxu0 0
            %405 = vmatpush1.bf16.msra.mxu0 0
            %406 = vmatprep.subr.bf16.mxu0 0
            %407 = vmatpush1.bf16.msra.mxu0 0
            %408 = vmatprep.mubr.bf16.mxu0 0
            %409 = vmatmul.mubr.bf16.gmra.mrb[0].mxu0 %v349
            %v410 = vpop.f32.mrb[0].mxu0
            %v411 = vadd.f32 0.0, %v410
            %v412 = vpop.f32.mrb[0].mxu0
            %v413 = vpop.f32.mrb[0].mxu0
            %v414 = vadd.f32 0.0, %v413
            %v415 = vpop.f32.mrb[0].mxu0
            %416 = vmatprep.mubr.bf16.mxu0 0
            %417 = vmatmul.mubr.bf16.gmra.mrb[0].mxu0 %v352
            %v418 = vpop.f32.mrb[0].mxu0
            %v419 = vadd.f32 0.0, %v418
            %v420 = vpop.f32.mrb[0].mxu0
            %v421 = vpop.f32.mrb[0].mxu0
            %v422 = vadd.f32 0.0, %v421
            %v423 = vpop.f32.mrb[0].mxu0
            %424 = vmatprep.mubr.bf16.mxu0 0
            %425 = vmatmul.mubr.bf16.gmra.mrb[0].mxu0 %v355
            %v426 = vpop.f32.mrb[0].mxu0
            %v427 = vadd.f32 0.0, %v426
            %v428 = vpop.f32.mrb[0].mxu0
            %v429 = vpop.f32.mrb[0].mxu0
            %v430 = vadd.f32 0.0, %v429
            %v431 = vpop.f32.mrb[0].mxu0
            %432 = vmatprep.mubr.bf16.mxu0 0
            %433 = vmatmul.mubr.bf16.gmra.mrb[0].mxu0 %v358
            %v434 = vpop.f32.mrb[0].mxu0
            %v435 = vadd.f32 0.0, %v434
            %v436 = vpop.f32.mrb[0].mxu0
            %v437 = vpop.f32.mrb[0].mxu0
            %v438 = vadd.f32 0.0, %v437
            %v439 = vpop.f32.mrb[0].mxu0
            %440 = vmatprep.mubr.bf16.mxu0 0
            %441 = vmatmul.mubr.bf16.gmra.mrb[0].mxu0 %v361
            %v442 = vpop.f32.mrb[0].mxu0
            %v443 = vadd.f32 0.0, %v442
            %v444 = vpop.f32.mrb[0].mxu0
            %v445 = vpop.f32.mrb[0].mxu0
            %v446 = vadd.f32 0.0, %v445
            %v447 = vpop.f32.mrb[0].mxu0
            %448 = vmatprep.mubr.bf16.mxu0 0
            %449 = vmatmul.mubr.bf16.gmra.mrb[0].mxu0 %v364
            %v450 = vpop.f32.mrb[0].mxu0
            %v451 = vadd.f32 0.0, %v450
            %v452 = vpop.f32.mrb[0].mxu0
            %v453 = vpop.f32.mrb[0].mxu0
            %v454 = vadd.f32 0.0, %v453
            %v455 = vpop.f32.mrb[0].mxu0
            %456 = vmatprep.mubr.bf16.mxu0 0
            %457 = vmatmul.mubr.bf16.gmra.mrb[0].mxu0 %v367
            %v458 = vpop.f32.mrb[0].mxu0
            %v459 = vadd.f32 0.0, %v458
            %v460 = vpop.f32.mrb[0].mxu0
            %v461 = vpop.f32.mrb[0].mxu0
            %v462 = vadd.f32 0.0, %v461
            %v463 = vpop.f32.mrb[0].mxu0
            %464 = vmatprep.mubr.bf16.mxu0 0
            %465 = vmatmul.mubr.bf16.gmra.mrb[0].mxu0 %v370
            %v466 = vpop.f32.mrb[0].mxu0
            %v467 = vadd.f32 0.0, %v466
            %v468 = vpop.f32.mrb[0].mxu0
            %v469 = vpop.f32.mrb[0].mxu0
            %v470 = vadd.f32 0.0, %v469
            %v471 = vpop.f32.mrb[0].mxu0
            %472 = vdwg.mxu0
            %v473 = vpack.c.bf16 %v414, %v411
            %v474 = vpack.c.bf16 %v422, %v419
            %v475 = vpack.c.bf16 %v430, %v427
            %v476 = vpack.c.bf16 %v438, %v435
            %v477 = vpack.c.bf16 %v446, %v443
            %v478 = vpack.c.bf16 %v454, %v451
            %v479 = vpack.c.bf16 %v462, %v459
            %v480 = vpack.c.bf16 %v470, %v467
            %vm481 = vcmask 261120
            %482 = vst.msk [vmem:[#allocation2] sm:$0xff] %vm481, %v473
            %483 = vst.msk [vmem:[#allocation2 + $0x8] sm:$0xff] %vm481, %v474
            %484 = vst.msk [vmem:[#allocation2 + $0x10] sm:$0xff] %vm481, %v475
            %485 = vst.msk [vmem:[#allocation2 + $0x18] sm:$0xff] %vm481, %v476
            %486 = vst.msk [vmem:[#allocation2 + $0x20] sm:$0xff] %vm481, %v477
            %487 = vst.msk [vmem:[#allocation2 + $0x28] sm:$0xff] %vm481, %v478
            %488 = vst.msk [vmem:[#allocation2 + $0x30] sm:$0xff] %vm481, %v479
            %489 = vst.msk [vmem:[#allocation2 + $0x38] sm:$0xff] %vm481, %v480
          $region68: #{tpu_custom_call.1} parent=63 // pred_fallthru
            _
          %p490 = scmp.eq.s32.totalorder %s24, 1
          // Predicated region
          $region69: #{tpu_custom_call.1} parent=63 // pred_check
            %p491 = pneg %p490
          $region70: #{tpu_custom_call.1} parent=63 // pred_check_branch
            %493 = sbr.rel (%p491) target = $region72
          $region71: #{tpu_custom_call.1} parent=63 // pred_region
            %v494 = vld [vmem:[#allocation12] sm:$0xf]
            %v495 = vld [vmem:[#allocation12 + $0x4] sm:$0xf]
            %v496 = vld [vmem:[#allocation12 + $0x8] sm:$0xf]
            %v497 = vld [vmem:[#allocation12 + $0xc] sm:$0xf]
            %v498 = vld [vmem:[#allocation12 + $0x10] sm:$0xf]
            %v499 = vld [vmem:[#allocation12 + $0x14] sm:$0xf]
            %v500 = vld [vmem:[#allocation12 + $0x18] sm:$0xf]
            %v501 = vld [vmem:[#allocation12 + $0x1c] sm:$0xf]
            %v502 = vld [vmem:[#allocation12 + $0x20] sm:$0xf]
            %v503 = vld [vmem:[#allocation12 + $0x24] sm:$0xf]
            %v504 = vld [vmem:[#allocation12 + $0x28] sm:$0xf]
            %v505 = vld [vmem:[#allocation12 + $0x2c] sm:$0xf]
            %v506 = vld [vmem:[#allocation12 + $0x30] sm:$0xf]
            %v507 = vld [vmem:[#allocation12 + $0x34] sm:$0xf]
            %v508 = vld [vmem:[#allocation12 + $0x38] sm:$0xf]
            %v509 = vld [vmem:[#allocation12 + $0x3c] sm:$0xf]
            %v510 = vld [vmem:[#allocation9] sm:$0xf]
            %v511 = vld [vmem:[#allocation9 + $0x4] sm:$0xf]
            %v512 = vld [vmem:[#allocation9 + $0x8] sm:$0xf]
            %v513 = vld [vmem:[#allocation9 + $0xc] sm:$0xf]
            %v530 = vunpack.c.l.b16 %v494
            %v531 = vunpack.c.l.b16 %v495
            %v532 = vunpack.c.l.b16 %v496
            %v533 = vunpack.c.l.b16 %v497
            %v534 = vunpack.c.l.b16 %v498
            %v535 = vunpack.c.l.b16 %v499
            %v536 = vunpack.c.l.b16 %v500
            %v537 = vunpack.c.l.b16 %v501
            %v538 = vunpack.c.l.b16 %v502
            %v539 = vunpack.c.l.b16 %v503
            %v540 = vunpack.c.l.b16 %v504
            %v541 = vunpack.c.l.b16 %v505
            %v542 = vunpack.c.l.b16 %v506
            %v543 = vunpack.c.l.b16 %v507
            %v544 = vunpack.c.l.b16 %v508
            %v545 = vunpack.c.l.b16 %v509
            %v546 = vpack.c.b16 %v531, %v530
            %v547 = vpack.c.b16 %v533, %v532
            %v548 = vpack.c.b16 %v535, %v534
            %v549 = vpack.c.b16 %v537, %v536
            %v550 = vpack.c.b16 %v539, %v538
            %v551 = vpack.c.b16 %v541, %v540
            %v552 = vpack.c.b16 %v543, %v542
            %v553 = vpack.c.b16 %v545, %v544
            %v558 = vunpack.c.l.b16 %v510
            %v559 = vunpack.c.l.b16 %v511
            %v560 = vunpack.c.l.b16 %v512
            %v561 = vunpack.c.l.b16 %v513
            %v562 = vpack.c.b16 %v559, %v558
            %v563 = vpack.c.b16 %v561, %v560
            %vm566 = vcmask 261120
            %v568 = vsel %vm566, %v546, 0
            %v571 = vsel %vm566, %v547, 0
            %v574 = vsel %vm566, %v548, 0
            %v577 = vsel %vm566, %v549, 0
            %v580 = vsel %vm566, %v550, 0
            %v583 = vsel %vm566, %v551, 0
            %v586 = vsel %vm566, %v552, 0
            %v589 = vsel %vm566, %v553, 0
            %591 = vmatprep.subr.bf16.mxu0 0
            %592 = vmatpush1.bf16.msra.mxu0 %v562
            %593 = vmatprep.subr.bf16.mxu0 0
            %594 = vmatpush1.bf16.msra.mxu0 %v563
            %595 = vmatprep.subr.bf16.mxu0 0
            %596 = vmatpush1.bf16.msra.mxu0 0
            %597 = vmatprep.subr.bf16.mxu0 0
            %598 = vmatpush1.bf16.msra.mxu0 0
            %599 = vmatprep.subr.bf16.mxu0 0
            %600 = vmatpush1.bf16.msra.mxu0 0
            %601 = vmatprep.subr.bf16.mxu0 0
            %602 = vmatpush1.bf16.msra.mxu0 0
            %603 = vmatprep.subr.bf16.mxu0 0
            %604 = vmatpush1.bf16.msra.mxu0 0
            %605 = vmatprep.subr.bf16.mxu0 0
            %606 = vmatpush1.bf16.msra.mxu0 0
            %607 = vmatprep.subr.bf16.mxu0 0
            %608 = vmatpush1.bf16.msra.mxu0 0
            %609 = vmatprep.subr.bf16.mxu0 0
            %610 = vmatpush1.bf16.msra.mxu0 0
            %611 = vmatprep.subr.bf16.mxu0 0
            %612 = vmatpush1.bf16.msra.mxu0 0
            %613 = vmatprep.subr.bf16.mxu0 0
            %614 = vmatpush1.bf16.msra.mxu0 0
            %615 = vmatprep.subr.bf16.mxu0 0
            %616 = vmatpush1.bf16.msra.mxu0 0
            %617 = vmatprep.subr.bf16.mxu0 0
            %618 = vmatpush1.bf16.msra.mxu0 0
            %619 = vmatprep.subr.bf16.mxu0 0
            %620 = vmatpush1.bf16.msra.mxu0 0
            %621 = vmatprep.subr.bf16.mxu0 0
            %622 = vmatpush1.bf16.msra.mxu0 0
            %623 = vmatprep.mubr.bf16.mxu0 0
            %624 = vmatmul.mubr.bf16.gmra.mrb[0].mxu0 %v568
            %v625 = vpop.f32.mrb[0].mxu0
            %v626 = vadd.f32 0.0, %v625
            %v627 = vpop.f32.mrb[0].mxu0
            %v628 = vpop.f32.mrb[0].mxu0
            %v629 = vadd.f32 0.0, %v628
            %v630 = vpop.f32.mrb[0].mxu0
            %631 = vmatprep.mubr.bf16.mxu0 0
            %632 = vmatmul.mubr.bf16.gmra.mrb[0].mxu0 %v571
            %v633 = vpop.f32.mrb[0].mxu0
            %v634 = vadd.f32 0.0, %v633
            %v635 = vpop.f32.mrb[0].mxu0
            %v636 = vpop.f32.mrb[0].mxu0
            %v637 = vadd.f32 0.0, %v636
            %v638 = vpop.f32.mrb[0].mxu0
            %639 = vmatprep.mubr.bf16.mxu0 0
            %640 = vmatmul.mubr.bf16.gmra.mrb[0].mxu0 %v574
            %v641 = vpop.f32.mrb[0].mxu0
            %v642 = vadd.f32 0.0, %v641
            %v643 = vpop.f32.mrb[0].mxu0
            %v644 = vpop.f32.mrb[0].mxu0
            %v645 = vadd.f32 0.0, %v644
            %v646 = vpop.f32.mrb[0].mxu0
            %647 = vmatprep.mubr.bf16.mxu0 0
            %648 = vmatmul.mubr.bf16.gmra.mrb[0].mxu0 %v577
            %v649 = vpop.f32.mrb[0].mxu0
            %v650 = vadd.f32 0.0, %v649
            %v651 = vpop.f32.mrb[0].mxu0
            %v652 = vpop.f32.mrb[0].mxu0
            %v653 = vadd.f32 0.0, %v652
            %v654 = vpop.f32.mrb[0].mxu0
            %655 = vmatprep.mubr.bf16.mxu0 0
            %656 = vmatmul.mubr.bf16.gmra.mrb[0].mxu0 %v580
            %v657 = vpop.f32.mrb[0].mxu0
            %v658 = vadd.f32 0.0, %v657
            %v659 = vpop.f32.mrb[0].mxu0
            %v660 = vpop.f32.mrb[0].mxu0
            %v661 = vadd.f32 0.0, %v660
            %v662 = vpop.f32.mrb[0].mxu0
            %663 = vmatprep.mubr.bf16.mxu0 0
            %664 = vmatmul.mubr.bf16.gmra.mrb[0].mxu0 %v583
            %v665 = vpop.f32.mrb[0].mxu0
            %v666 = vadd.f32 0.0, %v665
            %v667 = vpop.f32.mrb[0].mxu0
            %v668 = vpop.f32.mrb[0].mxu0
            %v669 = vadd.f32 0.0, %v668
            %v670 = vpop.f32.mrb[0].mxu0
            %671 = vmatprep.mubr.bf16.mxu0 0
            %672 = vmatmul.mubr.bf16.gmra.mrb[0].mxu0 %v586
            %v673 = vpop.f32.mrb[0].mxu0
            %v674 = vadd.f32 0.0, %v673
            %v675 = vpop.f32.mrb[0].mxu0
            %v676 = vpop.f32.mrb[0].mxu0
            %v677 = vadd.f32 0.0, %v676
            %v678 = vpop.f32.mrb[0].mxu0
            %679 = vmatprep.mubr.bf16.mxu0 0
            %680 = vmatmul.mubr.bf16.gmra.mrb[0].mxu0 %v589
            %v681 = vpop.f32.mrb[0].mxu0
            %v682 = vadd.f32 0.0, %v681
            %v683 = vpop.f32.mrb[0].mxu0
            %v684 = vpop.f32.mrb[0].mxu0
            %v685 = vadd.f32 0.0, %v684
            %v686 = vpop.f32.mrb[0].mxu0
            %687 = vdwg.mxu0
            %v688 = vpack.c.bf16 %v629, %v626
            %v689 = vpack.c.bf16 %v637, %v634
            %v690 = vpack.c.bf16 %v645, %v642
            %v691 = vpack.c.bf16 %v653, %v650
            %v692 = vpack.c.bf16 %v661, %v658
            %v693 = vpack.c.bf16 %v669, %v666
            %v694 = vpack.c.bf16 %v677, %v674
            %v695 = vpack.c.bf16 %v685, %v682
            %696 = vst.msk [vmem:[#allocation2] sm:$0xff] %vm566, %v688
            %697 = vst.msk [vmem:[#allocation2 + $0x8] sm:$0xff] %vm566, %v689
            %698 = vst.msk [vmem:[#allocation2 + $0x10] sm:$0xff] %vm566, %v690
            %699 = vst.msk [vmem:[#allocation2 + $0x18] sm:$0xff] %vm566, %v691
            %700 = vst.msk [vmem:[#allocation2 + $0x20] sm:$0xff] %vm566, %v692
            %701 = vst.msk [vmem:[#allocation2 + $0x28] sm:$0xff] %vm566, %v693
            %702 = vst.msk [vmem:[#allocation2 + $0x30] sm:$0xff] %vm566, %v694
            %703 = vst.msk [vmem:[#allocation2 + $0x38] sm:$0xff] %vm566, %v695
          $region72: #{tpu_custom_call.1} parent=63 // pred_fallthru
            _
          %p704 = scmp.eq.s32.totalorder %s24, 2
          // Predicated region
          $region73: #{tpu_custom_call.1} parent=63 // pred_check
            %p705 = pneg %p704
          $region74: #{tpu_custom_call.1} parent=63 // pred_check_branch
            %707 = sbr.rel (%p705) target = $region76
          $region75: #{tpu_custom_call.1} parent=63 // pred_region
            %v708 = vld [vmem:[#allocation12] sm:$0xf]
            %v709 = vld [vmem:[#allocation12 + $0x4] sm:$0xf]
            %v710 = vld [vmem:[#allocation12 + $0x8] sm:$0xf]
            %v711 = vld [vmem:[#allocation12 + $0xc] sm:$0xf]
            %v712 = vld [vmem:[#allocation12 + $0x10] sm:$0xf]
            %v713 = vld [vmem:[#allocation12 + $0x14] sm:$0xf]
            %v714 = vld [vmem:[#allocation12 + $0x18] sm:$0xf]
            %v715 = vld [vmem:[#allocation12 + $0x1c] sm:$0xf]
            %v716 = vld [vmem:[#allocation12 + $0x20] sm:$0xf]
            %v717 = vld [vmem:[#allocation12 + $0x24] sm:$0xf]
            %v718 = vld [vmem:[#allocation12 + $0x28] sm:$0xf]
            %v719 = vld [vmem:[#allocation12 + $0x2c] sm:$0xf]
            %v720 = vld [vmem:[#allocation12 + $0x30] sm:$0xf]
            %v721 = vld [vmem:[#allocation12 + $0x34] sm:$0xf]
            %v722 = vld [vmem:[#allocation12 + $0x38] sm:$0xf]
            %v723 = vld [vmem:[#allocation12 + $0x3c] sm:$0xf]
            %s724 = scalar_lea.vmem [#allocation9], 16
            %v725 = vld [vmem:[%s724] sm:$0xf]
            %v726 = vld [vmem:[%s724 + $0x4] sm:$0xf]
            %v727 = vld [vmem:[%s724 + $0x8] sm:$0xf]
            %v728 = vld [vmem:[%s724 + $0xc] sm:$0xf]
            %v745 = vunpack.c.l.b16 %v708
            %v746 = vunpack.c.l.b16 %v709
            %v747 = vunpack.c.l.b16 %v710
            %v748 = vunpack.c.l.b16 %v711
            %v749 = vunpack.c.l.b16 %v712
            %v750 = vunpack.c.l.b16 %v713
            %v751 = vunpack.c.l.b16 %v714
            %v752 = vunpack.c.l.b16 %v715
            %v753 = vunpack.c.l.b16 %v716
            %v754 = vunpack.c.l.b16 %v717
            %v755 = vunpack.c.l.b16 %v718
            %v756 = vunpack.c.l.b16 %v719
            %v757 = vunpack.c.l.b16 %v720
            %v758 = vunpack.c.l.b16 %v721
            %v759 = vunpack.c.l.b16 %v722
            %v760 = vunpack.c.l.b16 %v723
            %v761 = vpack.c.b16 %v746, %v745
            %v762 = vpack.c.b16 %v748, %v747
            %v763 = vpack.c.b16 %v750, %v749
            %v764 = vpack.c.b16 %v752, %v751
            %v765 = vpack.c.b16 %v754, %v753
            %v766 = vpack.c.b16 %v756, %v755
            %v767 = vpack.c.b16 %v758, %v757
            %v768 = vpack.c.b16 %v760, %v759
            %769 = vrot.lane.b32.xlu0 %v761, 96
            %v770 = vpop.permute.xlu0 %769
            %771 = vrot.lane.b32.xlu0 %v762, 96
            %v772 = vpop.permute.xlu0 %771
            %773 = vrot.lane.b32.xlu0 %v763, 96
            %v774 = vpop.permute.xlu0 %773
            %775 = vrot.lane.b32.xlu0 %v764, 96
            %v776 = vpop.permute.xlu0 %775
            %777 = vrot.lane.b32.xlu0 %v765, 96
            %v778 = vpop.permute.xlu0 %777
            %779 = vrot.lane.b32.xlu0 %v766, 96
            %v780 = vpop.permute.xlu0 %779
            %781 = vrot.lane.b32.xlu0 %v767, 96
            %v782 = vpop.permute.xlu0 %781
            %783 = vrot.lane.b32.xlu0 %v768, 96
            %v784 = vpop.permute.xlu0 %783
            %v789 = vunpack.c.l.b16 %v725
            %v790 = vunpack.c.l.b16 %v726
            %v791 = vunpack.c.l.b16 %v727
            %v792 = vunpack.c.l.b16 %v728
            %v793 = vpack.c.b16 %v790, %v789
            %v794 = vpack.c.b16 %v792, %v791
            %vm797 = vcmask 261120
            %v799 = vsel %vm797, %v770, 0
            %v802 = vsel %vm797, %v772, 0
            %v805 = vsel %vm797, %v774, 0
            %v808 = vsel %vm797, %v776, 0
            %v811 = vsel %vm797, %v778, 0
            %v814 = vsel %vm797, %v780, 0
            %v817 = vsel %vm797, %v782, 0
            %v820 = vsel %vm797, %v784, 0
            %822 = vmatprep.subr.bf16.mxu0 0
            %823 = vmatpush1.bf16.msra.mxu0 %v793
            %824 = vmatprep.subr.bf16.mxu0 0
            %825 = vmatpush1.bf16.msra.mxu0 %v794
            %826 = vmatprep.subr.bf16.mxu0 0
            %827 = vmatpush1.bf16.msra.mxu0 0
            %828 = vmatprep.subr.bf16.mxu0 0
            %829 = vmatpush1.bf16.msra.mxu0 0
            %830 = vmatprep.subr.bf16.mxu0 0
            %831 = vmatpush1.bf16.msra.mxu0 0
            %832 = vmatprep.subr.bf16.mxu0 0
            %833 = vmatpush1.bf16.msra.mxu0 0
            %834 = vmatprep.subr.bf16.mxu0 0
            %835 = vmatpush1.bf16.msra.mxu0 0
            %836 = vmatprep.subr.bf16.mxu0 0
            %837 = vmatpush1.bf16.msra.mxu0 0
            %838 = vmatprep.subr.bf16.mxu0 0
            %839 = vmatpush1.bf16.msra.mxu0 0
            %840 = vmatprep.subr.bf16.mxu0 0
            %841 = vmatpush1.bf16.msra.mxu0 0
            %842 = vmatprep.subr.bf16.mxu0 0
            %843 = vmatpush1.bf16.msra.mxu0 0
            %844 = vmatprep.subr.bf16.mxu0 0
            %845 = vmatpush1.bf16.msra.mxu0 0
            %846 = vmatprep.subr.bf16.mxu0 0
            %847 = vmatpush1.bf16.msra.mxu0 0
            %848 = vmatprep.subr.bf16.mxu0 0
            %849 = vmatpush1.bf16.msra.mxu0 0
            %850 = vmatprep.subr.bf16.mxu0 0
            %851 = vmatpush1.bf16.msra.mxu0 0
            %852 = vmatprep.subr.bf16.mxu0 0
            %853 = vmatpush1.bf16.msra.mxu0 0
            %854 = vmatprep.mubr.bf16.mxu0 0
            %855 = vmatmul.mubr.bf16.gmra.mrb[0].mxu0 %v799
            %v856 = vpop.f32.mrb[0].mxu0
            %v857 = vadd.f32 0.0, %v856
            %v858 = vpop.f32.mrb[0].mxu0
            %v859 = vpop.f32.mrb[0].mxu0
            %v860 = vadd.f32 0.0, %v859
            %v861 = vpop.f32.mrb[0].mxu0
            %862 = vmatprep.mubr.bf16.mxu0 0
            %863 = vmatmul.mubr.bf16.gmra.mrb[0].mxu0 %v802
            %v864 = vpop.f32.mrb[0].mxu0
            %v865 = vadd.f32 0.0, %v864
            %v866 = vpop.f32.mrb[0].mxu0
            %v867 = vpop.f32.mrb[0].mxu0
            %v868 = vadd.f32 0.0, %v867
            %v869 = vpop.f32.mrb[0].mxu0
            %870 = vmatprep.mubr.bf16.mxu0 0
            %871 = vmatmul.mubr.bf16.gmra.mrb[0].mxu0 %v805
            %v872 = vpop.f32.mrb[0].mxu0
            %v873 = vadd.f32 0.0, %v872
            %v874 = vpop.f32.mrb[0].mxu0
            %v875 = vpop.f32.mrb[0].mxu0
            %v876 = vadd.f32 0.0, %v875
            %v877 = vpop.f32.mrb[0].mxu0
            %878 = vmatprep.mubr.bf16.mxu0 0
            %879 = vmatmul.mubr.bf16.gmra.mrb[0].mxu0 %v808
            %v880 = vpop.f32.mrb[0].mxu0
            %v881 = vadd.f32 0.0, %v880
            %v882 = vpop.f32.mrb[0].mxu0
            %v883 = vpop.f32.mrb[0].mxu0
            %v884 = vadd.f32 0.0, %v883
            %v885 = vpop.f32.mrb[0].mxu0
            %886 = vmatprep.mubr.bf16.mxu0 0
            %887 = vmatmul.mubr.bf16.gmra.mrb[0].mxu0 %v811
            %v888 = vpop.f32.mrb[0].mxu0
            %v889 = vadd.f32 0.0, %v888
            %v890 = vpop.f32.mrb[0].mxu0
            %v891 = vpop.f32.mrb[0].mxu0
            %v892 = vadd.f32 0.0, %v891
            %v893 = vpop.f32.mrb[0].mxu0
            %894 = vmatprep.mubr.bf16.mxu0 0
            %895 = vmatmul.mubr.bf16.gmra.mrb[0].mxu0 %v814
            %v896 = vpop.f32.mrb[0].mxu0
            %v897 = vadd.f32 0.0, %v896
            %v898 = vpop.f32.mrb[0].mxu0
            %v899 = vpop.f32.mrb[0].mxu0
            %v900 = vadd.f32 0.0, %v899
            %v901 = vpop.f32.mrb[0].mxu0
            %902 = vmatprep.mubr.bf16.mxu0 0
            %903 = vmatmul.mubr.bf16.gmra.mrb[0].mxu0 %v817
            %v904 = vpop.f32.mrb[0].mxu0
            %v905 = vadd.f32 0.0, %v904
            %v906 = vpop.f32.mrb[0].mxu0
            %v907 = vpop.f32.mrb[0].mxu0
            %v908 = vadd.f32 0.0, %v907
            %v909 = vpop.f32.mrb[0].mxu0
            %910 = vmatprep.mubr.bf16.mxu0 0
            %911 = vmatmul.mubr.bf16.gmra.mrb[0].mxu0 %v820
            %v912 = vpop.f32.mrb[0].mxu0
            %v913 = vadd.f32 0.0, %v912
            %v914 = vpop.f32.mrb[0].mxu0
            %v915 = vpop.f32.mrb[0].mxu0
            %v916 = vadd.f32 0.0, %v915
            %v917 = vpop.f32.mrb[0].mxu0
            %918 = vdwg.mxu0
            %v919 = vpack.c.bf16 %v860, %v857
            %v920 = vpack.c.bf16 %v868, %v865
            %v921 = vpack.c.bf16 %v876, %v873
            %v922 = vpack.c.bf16 %v884, %v881
            %v923 = vpack.c.bf16 %v892, %v889
            %v924 = vpack.c.bf16 %v900, %v897
            %v925 = vpack.c.bf16 %v908, %v905
            %v926 = vpack.c.bf16 %v916, %v913
            %927 = vst.msk [vmem:[#allocation2] sm:$0xff] %vm797, %v919
            %928 = vst.msk [vmem:[#allocation2 + $0x8] sm:$0xff] %vm797, %v920
            %929 = vst.msk [vmem:[#allocation2 + $0x10] sm:$0xff] %vm797, %v921
            %930 = vst.msk [vmem:[#allocation2 + $0x18] sm:$0xff] %vm797, %v922
            %931 = vst.msk [vmem:[#allocation2 + $0x20] sm:$0xff] %vm797, %v923
            %932 = vst.msk [vmem:[#allocation2 + $0x28] sm:$0xff] %vm797, %v924
            %933 = vst.msk [vmem:[#allocation2 + $0x30] sm:$0xff] %vm797, %v925
            %934 = vst.msk [vmem:[#allocation2 + $0x38] sm:$0xff] %vm797, %v926
          $region76: #{tpu_custom_call.1} parent=63 // pred_fallthru
            _
          %p935 = scmp.eq.s32.totalorder %s24, 3
          // Predicated region
          $region77: #{tpu_custom_call.1} parent=63 // pred_check
            %p936 = pneg %p935
          $region78: #{tpu_custom_call.1} parent=63 // pred_check_branch
            %938 = sbr.rel (%p936) target = $region80
          $region79: #{tpu_custom_call.1} parent=63 // pred_region
            %v939 = vld [vmem:[#allocation12] sm:$0xf]
            %v940 = vld [vmem:[#allocation12 + $0x4] sm:$0xf]
            %v941 = vld [vmem:[#allocation12 + $0x8] sm:$0xf]
            %v942 = vld [vmem:[#allocation12 + $0xc] sm:$0xf]
            %v943 = vld [vmem:[#allocation12 + $0x10] sm:$0xf]
            %v944 = vld [vmem:[#allocation12 + $0x14] sm:$0xf]
            %v945 = vld [vmem:[#allocation12 + $0x18] sm:$0xf]
            %v946 = vld [vmem:[#allocation12 + $0x1c] sm:$0xf]
            %v947 = vld [vmem:[#allocation12 + $0x20] sm:$0xf]
            %v948 = vld [vmem:[#allocation12 + $0x24] sm:$0xf]
            %v949 = vld [vmem:[#allocation12 + $0x28] sm:$0xf]
            %v950 = vld [vmem:[#allocation12 + $0x2c] sm:$0xf]
            %v951 = vld [vmem:[#allocation12 + $0x30] sm:$0xf]
            %v952 = vld [vmem:[#allocation12 + $0x34] sm:$0xf]
            %v953 = vld [vmem:[#allocation12 + $0x38] sm:$0xf]
            %v954 = vld [vmem:[#allocation12 + $0x3c] sm:$0xf]
            %s955 = scalar_lea.vmem [#allocation9], 32
            %v956 = vld [vmem:[%s955] sm:$0xf]
            %v957 = vld [vmem:[%s955 + $0x4] sm:$0xf]
            %v958 = vld [vmem:[%s955 + $0x8] sm:$0xf]
            %v959 = vld [vmem:[%s955 + $0xc] sm:$0xf]
            %v976 = vunpack.c.l.b16 %v939
            %v977 = vunpack.c.l.b16 %v940
            %v978 = vunpack.c.l.b16 %v941
            %v979 = vunpack.c.l.b16 %v942
            %v980 = vunpack.c.l.b16 %v943
            %v981 = vunpack.c.l.b16 %v944
            %v982 = vunpack.c.l.b16 %v945
            %v983 = vunpack.c.l.b16 %v946
            %v984 = vunpack.c.l.b16 %v947
            %v985 = vunpack.c.l.b16 %v948
            %v986 = vunpack.c.l.b16 %v949
            %v987 = vunpack.c.l.b16 %v950
            %v988 = vunpack.c.l.b16 %v951
            %v989 = vunpack.c.l.b16 %v952
            %v990 = vunpack.c.l.b16 %v953
            %v991 = vunpack.c.l.b16 %v954
            %v992 = vpack.c.b16 %v977, %v976
            %v993 = vpack.c.b16 %v979, %v978
            %v994 = vpack.c.b16 %v981, %v980
            %v995 = vpack.c.b16 %v983, %v982
            %v996 = vpack.c.b16 %v985, %v984
            %v997 = vpack.c.b16 %v987, %v986
            %v998 = vpack.c.b16 %v989, %v988
            %v999 = vpack.c.b16 %v991, %v990
            %1000 = vrot.lane.b32.xlu0 %v992, 64
            %v1001 = vpop.permute.xlu0 %1000
            %1002 = vrot.lane.b32.xlu0 %v993, 64
            %v1003 = vpop.permute.xlu0 %1002
            %1004 = vrot.lane.b32.xlu0 %v994, 64
            %v1005 = vpop.permute.xlu0 %1004
            %1006 = vrot.lane.b32.xlu0 %v995, 64
            %v1007 = vpop.permute.xlu0 %1006
            %1008 = vrot.lane.b32.xlu0 %v996, 64
            %v1009 = vpop.permute.xlu0 %1008
            %1010 = vrot.lane.b32.xlu0 %v997, 64
            %v1011 = vpop.permute.xlu0 %1010
            %1012 = vrot.lane.b32.xlu0 %v998, 64
            %v1013 = vpop.permute.xlu0 %1012
            %1014 = vrot.lane.b32.xlu0 %v999, 64
            %v1015 = vpop.permute.xlu0 %1014
            %v1020 = vunpack.c.l.b16 %v956
            %v1021 = vunpack.c.l.b16 %v957
            %v1022 = vunpack.c.l.b16 %v958
            %v1023 = vunpack.c.l.b16 %v959
            %v1024 = vpack.c.b16 %v1021, %v1020
            %v1025 = vpack.c.b16 %v1023, %v1022
            %vm1028 = vcmask 261120
            %v1030 = vsel %vm1028, %v1001, 0
            %v1033 = vsel %vm1028, %v1003, 0
            %v1036 = vsel %vm1028, %v1005, 0
            %v1039 = vsel %vm1028, %v1007, 0
            %v1042 = vsel %vm1028, %v1009, 0
            %v1045 = vsel %vm1028, %v1011, 0
            %v1048 = vsel %vm1028, %v1013, 0
            %v1051 = vsel %vm1028, %v1015, 0
            %1053 = vmatprep.subr.bf16.mxu0 0
            %1054 = vmatpush1.bf16.msra.mxu0 %v1024
            %1055 = vmatprep.subr.bf16.mxu0 0
            %1056 = vmatpush1.bf16.msra.mxu0 %v1025
            %1057 = vmatprep.subr.bf16.mxu0 0
            %1058 = vmatpush1.bf16.msra.mxu0 0
            %1059 = vmatprep.subr.bf16.mxu0 0
            %1060 = vmatpush1.bf16.msra.mxu0 0
            %1061 = vmatprep.subr.bf16.mxu0 0
            %1062 = vmatpush1.bf16.msra.mxu0 0
            %1063 = vmatprep.subr.bf16.mxu0 0
            %1064 = vmatpush1.bf16.msra.mxu0 0
            %1065 = vmatprep.subr.bf16.mxu0 0
            %1066 = vmatpush1.bf16.msra.mxu0 0
            %1067 = vmatprep.subr.bf16.mxu0 0
            %1068 = vmatpush1.bf16.msra.mxu0 0
            %1069 = vmatprep.subr.bf16.mxu0 0
            %1070 = vmatpush1.bf16.msra.mxu0 0
            %1071 = vmatprep.subr.bf16.mxu0 0
            %1072 = vmatpush1.bf16.msra.mxu0 0
            %1073 = vmatprep.subr.bf16.mxu0 0
            %1074 = vmatpush1.bf16.msra.mxu0 0
            %1075 = vmatprep.subr.bf16.mxu0 0
            %1076 = vmatpush1.bf16.msra.mxu0 0
            %1077 = vmatprep.subr.bf16.mxu0 0
            %1078 = vmatpush1.bf16.msra.mxu0 0
            %1079 = vmatprep.subr.bf16.mxu0 0
            %1080 = vmatpush1.bf16.msra.mxu0 0
            %1081 = vmatprep.subr.bf16.mxu0 0
            %1082 = vmatpush1.bf16.msra.mxu0 0
            %1083 = vmatprep.subr.bf16.mxu0 0
            %1084 = vmatpush1.bf16.msra.mxu0 0
            %1085 = vmatprep.mubr.bf16.mxu0 0
            %1086 = vmatmul.mubr.bf16.gmra.mrb[0].mxu0 %v1030
            %v1087 = vpop.f32.mrb[0].mxu0
            %v1088 = vadd.f32 0.0, %v1087
            %v1089 = vpop.f32.mrb[0].mxu0
            %v1090 = vpop.f32.mrb[0].mxu0
            %v1091 = vadd.f32 0.0, %v1090
            %v1092 = vpop.f32.mrb[0].mxu0
            %1093 = vmatprep.mubr.bf16.mxu0 0
            %1094 = vmatmul.mubr.bf16.gmra.mrb[0].mxu0 %v1033
            %v1095 = vpop.f32.mrb[0].mxu0
            %v1096 = vadd.f32 0.0, %v1095
            %v1097 = vpop.f32.mrb[0].mxu0
            %v1098 = vpop.f32.mrb[0].mxu0
            %v1099 = vadd.f32 0.0, %v1098
            %v1100 = vpop.f32.mrb[0].mxu0
            %1101 = vmatprep.mubr.bf16.mxu0 0
            %1102 = vmatmul.mubr.bf16.gmra.mrb[0].mxu0 %v1036
            %v1103 = vpop.f32.mrb[0].mxu0
            %v1104 = vadd.f32 0.0, %v1103
            %v1105 = vpop.f32.mrb[0].mxu0
            %v1106 = vpop.f32.mrb[0].mxu0
            %v1107 = vadd.f32 0.0, %v1106
            %v1108 = vpop.f32.mrb[0].mxu0
            %1109 = vmatprep.mubr.bf16.mxu0 0
            %1110 = vmatmul.mubr.bf16.gmra.mrb[0].mxu0 %v1039
            %v1111 = vpop.f32.mrb[0].mxu0
            %v1112 = vadd.f32 0.0, %v1111
            %v1113 = vpop.f32.mrb[0].mxu0
            %v1114 = vpop.f32.mrb[0].mxu0
            %v1115 = vadd.f32 0.0, %v1114
            %v1116 = vpop.f32.mrb[0].mxu0
            %1117 = vmatprep.mubr.bf16.mxu0 0
            %1118 = vmatmul.mubr.bf16.gmra.mrb[0].mxu0 %v1042
            %v1119 = vpop.f32.mrb[0].mxu0
            %v1120 = vadd.f32 0.0, %v1119
            %v1121 = vpop.f32.mrb[0].mxu0
            %v1122 = vpop.f32.mrb[0].mxu0
            %v1123 = vadd.f32 0.0, %v1122
            %v1124 = vpop.f32.mrb[0].mxu0
            %1125 = vmatprep.mubr.bf16.mxu0 0
            %1126 = vmatmul.mubr.bf16.gmra.mrb[0].mxu0 %v1045
            %v1127 = vpop.f32.mrb[0].mxu0
            %v1128 = vadd.f32 0.0, %v1127
            %v1129 = vpop.f32.mrb[0].mxu0
            %v1130 = vpop.f32.mrb[0].mxu0
            %v1131 = vadd.f32 0.0, %v1130
            %v1132 = vpop.f32.mrb[0].mxu0
            %1133 = vmatprep.mubr.bf16.mxu0 0
            %1134 = vmatmul.mubr.bf16.gmra.mrb[0].mxu0 %v1048
            %v1135 = vpop.f32.mrb[0].mxu0
            %v1136 = vadd.f32 0.0, %v1135
            %v1137 = vpop.f32.mrb[0].mxu0
            %v1138 = vpop.f32.mrb[0].mxu0
            %v1139 = vadd.f32 0.0, %v1138
            %v1140 = vpop.f32.mrb[0].mxu0
            %1141 = vmatprep.mubr.bf16.mxu0 0
            %1142 = vmatmul.mubr.bf16.gmra.mrb[0].mxu0 %v1051
            %v1143 = vpop.f32.mrb[0].mxu0
            %v1144 = vadd.f32 0.0, %v1143
            %v1145 = vpop.f32.mrb[0].mxu0
            %v1146 = vpop.f32.mrb[0].mxu0
            %v1147 = vadd.f32 0.0, %v1146
            %v1148 = vpop.f32.mrb[0].mxu0
            %1149 = vdwg.mxu0
            %v1150 = vpack.c.bf16 %v1091, %v1088
            %v1151 = vpack.c.bf16 %v1099, %v1096
            %v1152 = vpack.c.bf16 %v1107, %v1104
            %v1153 = vpack.c.bf16 %v1115, %v1112
            %v1154 = vpack.c.bf16 %v1123, %v1120
            %v1155 = vpack.c.bf16 %v1131, %v1128
            %v1156 = vpack.c.bf16 %v1139, %v1136
            %v1157 = vpack.c.bf16 %v1147, %v1144
            %1158 = vst.msk [vmem:[#allocation2] sm:$0xff] %vm1028, %v1150
            %1159 = vst.msk [vmem:[#allocation2 + $0x8] sm:$0xff] %vm1028, %v1151
            %1160 = vst.msk [vmem:[#allocation2 + $0x10] sm:$0xff] %vm1028, %v1152
            %1161 = vst.msk [vmem:[#allocation2 + $0x18] sm:$0xff] %vm1028, %v1153
            %1162 = vst.msk [vmem:[#allocation2 + $0x20] sm:$0xff] %vm1028, %v1154
            %1163 = vst.msk [vmem:[#allocation2 + $0x28] sm:$0xff] %vm1028, %v1155
            %1164 = vst.msk [vmem:[#allocation2 + $0x30] sm:$0xff] %vm1028, %v1156
            %1165 = vst.msk [vmem:[#allocation2 + $0x38] sm:$0xff] %vm1028, %v1157
          $region80: #{tpu_custom_call.1} parent=63 // pred_fallthru
            _
        $region64: #{tpu_custom_call.1} parent=39 // pred_fallthru
          _
        %v1166 = vld [vmem:[#allocation3] sm:$0xf]
        %v1167 = vld [vmem:[#allocation3 + $0x4] sm:$0xf]
        %v1168 = vld [vmem:[#allocation3 + $0x8] sm:$0xf]
        %v1169 = vld [vmem:[#allocation3 + $0xc] sm:$0xf]
        %v1170 = vld [vmem:[#allocation3 + $0x10] sm:$0xf]
        %v1171 = vld [vmem:[#allocation3 + $0x14] sm:$0xf]
        %v1172 = vld [vmem:[#allocation3 + $0x18] sm:$0xf]
        %v1173 = vld [vmem:[#allocation3 + $0x1c] sm:$0xf]
        %v1174 = vld [vmem:[#allocation3 + $0x20] sm:$0xf]
        %v1175 = vld [vmem:[#allocation3 + $0x24] sm:$0xf]
        %v1176 = vld [vmem:[#allocation3 + $0x28] sm:$0xf]
        %v1177 = vld [vmem:[#allocation3 + $0x2c] sm:$0xf]
        %v1178 = vld [vmem:[#allocation3 + $0x30] sm:$0xf]
        %v1179 = vld [vmem:[#allocation3 + $0x34] sm:$0xf]
        %v1180 = vld [vmem:[#allocation3 + $0x38] sm:$0xf]
        %v1181 = vld [vmem:[#allocation3 + $0x3c] sm:$0xf]
        %v1182 = vld [vmem:[#allocation2] sm:$0xff]
        %v1183 = vld [vmem:[#allocation2 + $0x8] sm:$0xff]
        %v1184 = vld [vmem:[#allocation2 + $0x10] sm:$0xff]
        %v1185 = vld [vmem:[#allocation2 + $0x18] sm:$0xff]
        %v1186 = vld [vmem:[#allocation2 + $0x20] sm:$0xff]
        %v1187 = vld [vmem:[#allocation2 + $0x28] sm:$0xff]
        %v1188 = vld [vmem:[#allocation2 + $0x30] sm:$0xff]
        %v1189 = vld [vmem:[#allocation2 + $0x38] sm:$0xff]
        %v1206 = vunpack.c.l.b16 %v1166
        %v1207 = vunpack.c.l.b16 %v1167
        %v1208 = vunpack.c.l.b16 %v1168
        %v1209 = vunpack.c.l.b16 %v1169
        %v1210 = vunpack.c.l.b16 %v1170
        %v1211 = vunpack.c.l.b16 %v1171
        %v1212 = vunpack.c.l.b16 %v1172
        %v1213 = vunpack.c.l.b16 %v1173
        %v1214 = vunpack.c.l.b16 %v1174
        %v1215 = vunpack.c.l.b16 %v1175
        %v1216 = vunpack.c.l.b16 %v1176
        %v1217 = vunpack.c.l.b16 %v1177
        %v1218 = vunpack.c.l.b16 %v1178
        %v1219 = vunpack.c.l.b16 %v1179
        %v1220 = vunpack.c.l.b16 %v1180
        %v1221 = vunpack.c.l.b16 %v1181
        %v1222 = vpack.c.b16 %v1207, %v1206
        %v1223 = vpack.c.b16 %v1209, %v1208
        %v1224 = vpack.c.b16 %v1211, %v1210
        %v1225 = vpack.c.b16 %v1213, %v1212
        %v1226 = vpack.c.b16 %v1215, %v1214
        %v1227 = vpack.c.b16 %v1217, %v1216
        %v1228 = vpack.c.b16 %v1219, %v1218
        %v1229 = vpack.c.b16 %v1221, %v1220
        %1238 = vmatprep.subr.bf16.mxu0 0
        %1239 = vmatpush1.bf16.msra.mxu0 %v1182
        %1240 = vmatprep.subr.bf16.mxu0 0
        %1241 = vmatpush1.bf16.msra.mxu0 %v1183
        %1242 = vmatprep.subr.bf16.mxu0 0
        %1243 = vmatpush1.bf16.msra.mxu0 %v1184
        %1244 = vmatprep.subr.bf16.mxu0 0
        %1245 = vmatpush1.bf16.msra.mxu0 %v1185
        %1246 = vmatprep.subr.bf16.mxu0 0
        %1247 = vmatpush1.bf16.msra.mxu0 %v1186
        %1248 = vmatprep.subr.bf16.mxu0 0
        %1249 = vmatpush1.bf16.msra.mxu0 %v1187
        %1250 = vmatprep.subr.bf16.mxu0 0
        %1251 = vmatpush1.bf16.msra.mxu0 %v1188
        %1252 = vmatprep.subr.bf16.mxu0 0
        %1253 = vmatpush1.bf16.msra.mxu0 %v1189
        %1254 = vmatprep.subr.bf16.mxu0 0
        %1255 = vmatpush1.bf16.msra.mxu0 0
        %1256 = vmatprep.subr.bf16.mxu0 0
        %1257 = vmatpush1.bf16.msra.mxu0 0
        %1258 = vmatprep.subr.bf16.mxu0 0
        %1259 = vmatpush1.bf16.msra.mxu0 0
        %1260 = vmatprep.subr.bf16.mxu0 0
        %1261 = vmatpush1.bf16.msra.mxu0 0
        %1262 = vmatprep.subr.bf16.mxu0 0
        %1263 = vmatpush1.bf16.msra.mxu0 0
        %1264 = vmatprep.subr.bf16.mxu0 0
        %1265 = vmatpush1.bf16.msra.mxu0 0
        %1266 = vmatprep.subr.bf16.mxu0 0
        %1267 = vmatpush1.bf16.msra.mxu0 0
        %1268 = vmatprep.subr.bf16.mxu0 0
        %1269 = vmatpush1.bf16.msra.mxu0 0
        %1270 = vmatprep.mubr.bf16.mxu0 0
        %1271 = vmatmul.mubr.bf16.gmra.mrb[0].mxu0 %v1222
        %v1272 = vpop.f32.mrb[0].mxu0
        %v1273 = vadd.f32 0.0, %v1272
        %v1274 = vpop.f32.mrb[0].mxu0
        %v1275 = vpop.f32.mrb[0].mxu0
        %v1276 = vadd.f32 0.0, %v1275
        %v1277 = vpop.f32.mrb[0].mxu0
        %1278 = vmatprep.mubr.bf16.mxu0 0
        %1279 = vmatmul.mubr.bf16.gmra.mrb[0].mxu0 %v1223
        %v1280 = vpop.f32.mrb[0].mxu0
        %v1281 = vadd.f32 0.0, %v1280
        %v1282 = vpop.f32.mrb[0].mxu0
        %v1283 = vpop.f32.mrb[0].mxu0
        %v1284 = vadd.f32 0.0, %v1283
        %v1285 = vpop.f32.mrb[0].mxu0
        %1286 = vmatprep.mubr.bf16.mxu0 0
        %1287 = vmatmul.mubr.bf16.gmra.mrb[0].mxu0 %v1224
        %v1288 = vpop.f32.mrb[0].mxu0
        %v1289 = vadd.f32 0.0, %v1288
        %v1290 = vpop.f32.mrb[0].mxu0
        %v1291 = vpop.f32.mrb[0].mxu0
        %v1292 = vadd.f32 0.0, %v1291
        %v1293 = vpop.f32.mrb[0].mxu0
        %1294 = vmatprep.mubr.bf16.mxu0 0
        %1295 = vmatmul.mubr.bf16.gmra.mrb[0].mxu0 %v1225
        %v1296 = vpop.f32.mrb[0].mxu0
        %v1297 = vadd.f32 0.0, %v1296
        %v1298 = vpop.f32.mrb[0].mxu0
        %v1299 = vpop.f32.mrb[0].mxu0
        %v1300 = vadd.f32 0.0, %v1299
        %v1301 = vpop.f32.mrb[0].mxu0
        %1302 = vmatprep.mubr.bf16.mxu0 0
        %1303 = vmatmul.mubr.bf16.gmra.mrb[0].mxu0 %v1226
        %v1304 = vpop.f32.mrb[0].mxu0
        %v1305 = vadd.f32 0.0, %v1304
        %v1306 = vpop.f32.mrb[0].mxu0
        %v1307 = vpop.f32.mrb[0].mxu0
        %v1308 = vadd.f32 0.0, %v1307
        %v1309 = vpop.f32.mrb[0].mxu0
        %1310 = vmatprep.mubr.bf16.mxu0 0
        %1311 = vmatmul.mubr.bf16.gmra.mrb[0].mxu0 %v1227
        %v1312 = vpop.f32.mrb[0].mxu0
        %v1313 = vadd.f32 0.0, %v1312
        %v1314 = vpop.f32.mrb[0].mxu0
        %v1315 = vpop.f32.mrb[0].mxu0
        %v1316 = vadd.f32 0.0, %v1315
        %v1317 = vpop.f32.mrb[0].mxu0
        %1318 = vmatprep.mubr.bf16.mxu0 0
        %1319 = vmatmul.mubr.bf16.gmra.mrb[0].mxu0 %v1228
        %v1320 = vpop.f32.mrb[0].mxu0
        %v1321 = vadd.f32 0.0, %v1320
        %v1322 = vpop.f32.mrb[0].mxu0
        %v1323 = vpop.f32.mrb[0].mxu0
        %v1324 = vadd.f32 0.0, %v1323
        %v1325 = vpop.f32.mrb[0].mxu0
        %1326 = vmatprep.mubr.bf16.mxu0 0
        %1327 = vmatmul.mubr.bf16.gmra.mrb[0].mxu0 %v1229
        %v1328 = vpop.f32.mrb[0].mxu0
        %v1329 = vadd.f32 0.0, %v1328
        %v1330 = vpop.f32.mrb[0].mxu0
        %v1331 = vpop.f32.mrb[0].mxu0
        %v1332 = vadd.f32 0.0, %v1331
        %v1333 = vpop.f32.mrb[0].mxu0
        %1334 = vdwg.mxu0
        %s1335 = smul.u32 %s25, 128
        %p1336 = scmp.eq.s32.totalorder %s24, 0
        // Predicated region
        $region81: #{tpu_custom_call.1} parent=39 // pred_check
          %p1337 = pneg %p1336
        $region82: #{tpu_custom_call.1} parent=39 // pred_check_branch
          %1339 = sbr.rel (%p1337) target = $region84
        $region83: #{tpu_custom_call.1} parent=39 // pred_region
          %v1340 = vld [vmem:[#allocation11] sm:$0x1]
          %v1341 = vlaneseq
          %v1342 = vshrl.u32 %v1341, 7
          %v1343 = vsub.s32 0, %v1342
          %v1344 = vrot.slane %v1340, %v1343
          %v1345 = vadd.f32 %v1273, %v1344
          %v1346 = vadd.f32 %v1276, %v1344
          %v1347 = vadd.f32 %v1281, %v1344
          %v1348 = vadd.f32 %v1284, %v1344
          %v1349 = vadd.f32 %v1289, %v1344
          %v1350 = vadd.f32 %v1292, %v1344
          %v1351 = vadd.f32 %v1297, %v1344
          %v1352 = vadd.f32 %v1300, %v1344
          %v1353 = vadd.f32 %v1305, %v1344
          %v1354 = vadd.f32 %v1308, %v1344
          %v1355 = vadd.f32 %v1313, %v1344
          %v1356 = vadd.f32 %v1316, %v1344
          %v1357 = vadd.f32 %v1321, %v1344
          %v1358 = vadd.f32 %v1324, %v1344
          %v1359 = vadd.f32 %v1329, %v1344
          %v1360 = vadd.f32 %v1332, %v1344
          %v1361 = vtanh.pop %v1345
          %v1362 = vtanh.pop %v1346
          %v1363 = vtanh.pop %v1347
          %v1364 = vtanh.pop %v1348
          %v1365 = vtanh.pop %v1349
          %v1366 = vtanh.pop %v1350
          %v1367 = vtanh.pop %v1351
          %v1368 = vtanh.pop %v1352
          %v1369 = vtanh.pop %v1353
          %v1370 = vtanh.pop %v1354
          %v1371 = vtanh.pop %v1355
          %v1372 = vtanh.pop %v1356
          %v1373 = vtanh.pop %v1357
          %v1374 = vtanh.pop %v1358
          %v1375 = vtanh.pop %v1359
          %v1376 = vtanh.pop %v1360
          %v1377 = vpack.c.bf16 %v1362, %v1361
          %v1378 = vpack.c.bf16 %v1364, %v1363
          %v1379 = vpack.c.bf16 %v1366, %v1365
          %v1380 = vpack.c.bf16 %v1368, %v1367
          %v1381 = vpack.c.bf16 %v1370, %v1369
          %v1382 = vpack.c.bf16 %v1372, %v1371
          %v1383 = vpack.c.bf16 %v1374, %v1373
          %v1384 = vpack.c.bf16 %v1376, %v1375
          %v1393 = vunpack.c.l.b16 %v1377
          %v1394 = vunpack.c.h.b16 %v1377
          %v1395 = vunpack.c.l.b16 %v1378
          %v1396 = vunpack.c.h.b16 %v1378
          %v1397 = vunpack.c.l.b16 %v1379
          %v1398 = vunpack.c.h.b16 %v1379
          %v1399 = vunpack.c.l.b16 %v1380
          %v1400 = vunpack.c.h.b16 %v1380
          %v1401 = vunpack.c.l.b16 %v1381
          %v1402 = vunpack.c.h.b16 %v1381
          %v1403 = vunpack.c.l.b16 %v1382
          %v1404 = vunpack.c.h.b16 %v1382
          %v1405 = vunpack.c.l.b16 %v1383
          %v1406 = vunpack.c.h.b16 %v1383
          %v1407 = vunpack.c.l.b16 %v1384
          %v1408 = vunpack.c.h.b16 %v1384
          %v1409 = vpack.c.b16 %v1393, %v1393
          %v1410 = vpack.c.b16 %v1394, %v1394
          %v1411 = vpack.c.b16 %v1395, %v1395
          %v1412 = vpack.c.b16 %v1396, %v1396
          %v1413 = vpack.c.b16 %v1397, %v1397
          %v1414 = vpack.c.b16 %v1398, %v1398
          %v1415 = vpack.c.b16 %v1399, %v1399
          %v1416 = vpack.c.b16 %v1400, %v1400
          %v1417 = vpack.c.b16 %v1401, %v1401
          %v1418 = vpack.c.b16 %v1402, %v1402
          %v1419 = vpack.c.b16 %v1403, %v1403
          %v1420 = vpack.c.b16 %v1404, %v1404
          %v1421 = vpack.c.b16 %v1405, %v1405
          %v1422 = vpack.c.b16 %v1406, %v1406
          %v1423 = vpack.c.b16 %v1407, %v1407
          %v1424 = vpack.c.b16 %v1408, %v1408
          %s1441 = sshra.s32 %s1335, 3
          %s1442 = sand.u32 %s1335, 7
          %s1443 = smul.addr %s1441, 4
          %s1444 = scalar_lea.vmem [#allocation12], %s1443
          %vm1445 = vcmask 257024
          %1446 = vst.msk [vmem:[%s1444] sm:$0xf] %vm1445, %v1409
          %1447 = vst.msk [vmem:[%s1444 + $0x4] sm:$0xf] %vm1445, %v1410
          %1448 = vst.msk [vmem:[%s1444 + $0x8] sm:$0xf] %vm1445, %v1411
          %1449 = vst.msk [vmem:[%s1444 + $0xc] sm:$0xf] %vm1445, %v1412
          %1450 = vst.msk [vmem:[%s1444 + $0x10] sm:$0xf] %vm1445, %v1413
          %1451 = vst.msk [vmem:[%s1444 + $0x14] sm:$0xf] %vm1445, %v1414
          %1452 = vst.msk [vmem:[%s1444 + $0x18] sm:$0xf] %vm1445, %v1415
          %1453 = vst.msk [vmem:[%s1444 + $0x1c] sm:$0xf] %vm1445, %v1416
          %1454 = vst.msk [vmem:[%s1444 + $0x20] sm:$0xf] %vm1445, %v1417
          %1455 = vst.msk [vmem:[%s1444 + $0x24] sm:$0xf] %vm1445, %v1418
          %1456 = vst.msk [vmem:[%s1444 + $0x28] sm:$0xf] %vm1445, %v1419
          %1457 = vst.msk [vmem:[%s1444 + $0x2c] sm:$0xf] %vm1445, %v1420
          %1458 = vst.msk [vmem:[%s1444 + $0x30] sm:$0xf] %vm1445, %v1421
          %1459 = vst.msk [vmem:[%s1444 + $0x34] sm:$0xf] %vm1445, %v1422
          %1460 = vst.msk [vmem:[%s1444 + $0x38] sm:$0xf] %vm1445, %v1423
          %1461 = vst.msk [vmem:[%s1444 + $0x3c] sm:$0xf] %vm1445, %v1424
        $region84: #{tpu_custom_call.1} parent=39 // pred_fallthru
          _
        %p1462 = scmp.eq.s32.totalorder %s24, 1
        // Predicated region
        $region85: #{tpu_custom_call.1} parent=39 // pred_check
          %p1463 = pneg %p1462
        $region86: #{tpu_custom_call.1} parent=39 // pred_check_branch
          %1465 = sbr.rel (%p1463) target = $region88
        $region87: #{tpu_custom_call.1} parent=39 // pred_region
          %v1466 = vld [vmem:[#allocation11 + $0x1] sm:$0x1]
          %v1467 = vlaneseq
          %v1468 = vshrl.u32 %v1467, 7
          %v1469 = vsub.s32 0, %v1468
          %v1470 = vrot.slane %v1466, %v1469
          %v1471 = vadd.f32 %v1273, %v1470
          %v1472 = vadd.f32 %v1276, %v1470
          %v1473 = vadd.f32 %v1281, %v1470
          %v1474 = vadd.f32 %v1284, %v1470
          %v1475 = vadd.f32 %v1289, %v1470
          %v1476 = vadd.f32 %v1292, %v1470
          %v1477 = vadd.f32 %v1297, %v1470
          %v1478 = vadd.f32 %v1300, %v1470
          %v1479 = vadd.f32 %v1305, %v1470
          %v1480 = vadd.f32 %v1308, %v1470
          %v1481 = vadd.f32 %v1313, %v1470
          %v1482 = vadd.f32 %v1316, %v1470
          %v1483 = vadd.f32 %v1321, %v1470
          %v1484 = vadd.f32 %v1324, %v1470
          %v1485 = vadd.f32 %v1329, %v1470
          %v1486 = vadd.f32 %v1332, %v1470
          %v1487 = vtanh.pop %v1471
          %v1488 = vtanh.pop %v1472
          %v1489 = vtanh.pop %v1473
          %v1490 = vtanh.pop %v1474
          %v1491 = vtanh.pop %v1475
          %v1492 = vtanh.pop %v1476
          %v1493 = vtanh.pop %v1477
          %v1494 = vtanh.pop %v1478
          %v1495 = vtanh.pop %v1479
          %v1496 = vtanh.pop %v1480
          %v1497 = vtanh.pop %v1481
          %v1498 = vtanh.pop %v1482
          %v1499 = vtanh.pop %v1483
          %v1500 = vtanh.pop %v1484
          %v1501 = vtanh.pop %v1485
          %v1502 = vtanh.pop %v1486
          %v1503 = vpack.c.bf16 %v1488, %v1487
          %v1504 = vpack.c.bf16 %v1490, %v1489
          %v1505 = vpack.c.bf16 %v1492, %v1491
          %v1506 = vpack.c.bf16 %v1494, %v1493
          %v1507 = vpack.c.bf16 %v1496, %v1495
          %v1508 = vpack.c.bf16 %v1498, %v1497
          %v1509 = vpack.c.bf16 %v1500, %v1499
          %v1510 = vpack.c.bf16 %v1502, %v1501
          %v1519 = vunpack.c.l.b16 %v1503
          %v1520 = vunpack.c.h.b16 %v1503
          %v1521 = vunpack.c.l.b16 %v1504
          %v1522 = vunpack.c.h.b16 %v1504
          %v1523 = vunpack.c.l.b16 %v1505
          %v1524 = vunpack.c.h.b16 %v1505
          %v1525 = vunpack.c.l.b16 %v1506
          %v1526 = vunpack.c.h.b16 %v1506
          %v1527 = vunpack.c.l.b16 %v1507
          %v1528 = vunpack.c.h.b16 %v1507
          %v1529 = vunpack.c.l.b16 %v1508
          %v1530 = vunpack.c.h.b16 %v1508
          %v1531 = vunpack.c.l.b16 %v1509
          %v1532 = vunpack.c.h.b16 %v1509
          %v1533 = vunpack.c.l.b16 %v1510
          %v1534 = vunpack.c.h.b16 %v1510
          %v1535 = vpack.c.b16 %v1519, %v1519
          %v1536 = vpack.c.b16 %v1520, %v1520
          %v1537 = vpack.c.b16 %v1521, %v1521
          %v1538 = vpack.c.b16 %v1522, %v1522
          %v1539 = vpack.c.b16 %v1523, %v1523
          %v1540 = vpack.c.b16 %v1524, %v1524
          %v1541 = vpack.c.b16 %v1525, %v1525
          %v1542 = vpack.c.b16 %v1526, %v1526
          %v1543 = vpack.c.b16 %v1527, %v1527
          %v1544 = vpack.c.b16 %v1528, %v1528
          %v1545 = vpack.c.b16 %v1529, %v1529
          %v1546 = vpack.c.b16 %v1530, %v1530
          %v1547 = vpack.c.b16 %v1531, %v1531
          %v1548 = vpack.c.b16 %v1532, %v1532
          %v1549 = vpack.c.b16 %v1533, %v1533
          %v1550 = vpack.c.b16 %v1534, %v1534
          %1551 = vrot.lane.b32.xlu0 %v1535, 32
          %v1552 = vpop.permute.xlu0 %1551
          %1553 = vrot.lane.b32.xlu0 %v1536, 32
          %v1554 = vpop.permute.xlu0 %1553
          %1555 = vrot.lane.b32.xlu0 %v1537, 32
          %v1556 = vpop.permute.xlu0 %1555
          %1557 = vrot.lane.b32.xlu0 %v1538, 32
          %v1558 = vpop.permute.xlu0 %1557
          %1559 = vrot.lane.b32.xlu0 %v1539, 32
          %v1560 = vpop.permute.xlu0 %1559
          %1561 = vrot.lane.b32.xlu0 %v1540, 32
          %v1562 = vpop.permute.xlu0 %1561
          %1563 = vrot.lane.b32.xlu0 %v1541, 32
          %v1564 = vpop.permute.xlu0 %1563
          %1565 = vrot.lane.b32.xlu0 %v1542, 32
          %v1566 = vpop.permute.xlu0 %1565
          %1567 = vrot.lane.b32.xlu0 %v1543, 32
          %v1568 = vpop.permute.xlu0 %1567
          %1569 = vrot.lane.b32.xlu0 %v1544, 32
          %v1570 = vpop.permute.xlu0 %1569
          %1571 = vrot.lane.b32.xlu0 %v1545, 32
          %v1572 = vpop.permute.xlu0 %1571
          %1573 = vrot.lane.b32.xlu0 %v1546, 32
          %v1574 = vpop.permute.xlu0 %1573
          %1575 = vrot.lane.b32.xlu0 %v1547, 32
          %v1576 = vpop.permute.xlu0 %1575
          %1577 = vrot.lane.b32.xlu0 %v1548, 32
          %v1578 = vpop.permute.xlu0 %1577
          %1579 = vrot.lane.b32.xlu0 %v1549, 32
          %v1580 = vpop.permute.xlu0 %1579
          %1581 = vrot.lane.b32.xlu0 %v1550, 32
          %v1582 = vpop.permute.xlu0 %1581
          %s1599 = sshra.s32 %s1335, 3
          %s1600 = sand.u32 %s1335, 7
          %s1601 = smul.addr %s1599, 4
          %s1602 = scalar_lea.vmem [#allocation12], %s1601
          %vm1603 = vcmask 519424
          %1604 = vst.msk [vmem:[%s1602] sm:$0xf] %vm1603, %v1552
          %1605 = vst.msk [vmem:[%s1602 + $0x4] sm:$0xf] %vm1603, %v1554
          %1606 = vst.msk [vmem:[%s1602 + $0x8] sm:$0xf] %vm1603, %v1556
          %1607 = vst.msk [vmem:[%s1602 + $0xc] sm:$0xf] %vm1603, %v1558
          %1608 = vst.msk [vmem:[%s1602 + $0x10] sm:$0xf] %vm1603, %v1560
          %1609 = vst.msk [vmem:[%s1602 + $0x14] sm:$0xf] %vm1603, %v1562
          %1610 = vst.msk [vmem:[%s1602 + $0x18] sm:$0xf] %vm1603, %v1564
          %1611 = vst.msk [vmem:[%s1602 + $0x1c] sm:$0xf] %vm1603, %v1566
          %1612 = vst.msk [vmem:[%s1602 + $0x20] sm:$0xf] %vm1603, %v1568
          %1613 = vst.msk [vmem:[%s1602 + $0x24] sm:$0xf] %vm1603, %v1570
          %1614 = vst.msk [vmem:[%s1602 + $0x28] sm:$0xf] %vm1603, %v1572
          %1615 = vst.msk [vmem:[%s1602 + $0x2c] sm:$0xf] %vm1603, %v1574
          %1616 = vst.msk [vmem:[%s1602 + $0x30] sm:$0xf] %vm1603, %v1576
          %1617 = vst.msk [vmem:[%s1602 + $0x34] sm:$0xf] %vm1603, %v1578
          %1618 = vst.msk [vmem:[%s1602 + $0x38] sm:$0xf] %vm1603, %v1580
          %1619 = vst.msk [vmem:[%s1602 + $0x3c] sm:$0xf] %vm1603, %v1582
        $region88: #{tpu_custom_call.1} parent=39 // pred_fallthru
          _
        %p1620 = scmp.eq.s32.totalorder %s24, 2
        // Predicated region
        $region89: #{tpu_custom_call.1} parent=39 // pred_check
          %p1621 = pneg %p1620
        $region90: #{tpu_custom_call.1} parent=39 // pred_check_branch
          %1623 = sbr.rel (%p1621) target = $region92
        $region91: #{tpu_custom_call.1} parent=39 // pred_region
          %v1624 = vld [vmem:[#allocation11 + $0x2] sm:$0x1]
          %v1625 = vlaneseq
          %v1626 = vshrl.u32 %v1625, 7
          %v1627 = vsub.s32 0, %v1626
          %v1628 = vrot.slane %v1624, %v1627
          %v1629 = vadd.f32 %v1273, %v1628
          %v1630 = vadd.f32 %v1276, %v1628
          %v1631 = vadd.f32 %v1281, %v1628
          %v1632 = vadd.f32 %v1284, %v1628
          %v1633 = vadd.f32 %v1289, %v1628
          %v1634 = vadd.f32 %v1292, %v1628
          %v1635 = vadd.f32 %v1297, %v1628
          %v1636 = vadd.f32 %v1300, %v1628
          %v1637 = vadd.f32 %v1305, %v1628
          %v1638 = vadd.f32 %v1308, %v1628
          %v1639 = vadd.f32 %v1313, %v1628
          %v1640 = vadd.f32 %v1316, %v1628
          %v1641 = vadd.f32 %v1321, %v1628
          %v1642 = vadd.f32 %v1324, %v1628
          %v1643 = vadd.f32 %v1329, %v1628
          %v1644 = vadd.f32 %v1332, %v1628
          %v1645 = vtanh.pop %v1629
          %v1646 = vtanh.pop %v1630
          %v1647 = vtanh.pop %v1631
          %v1648 = vtanh.pop %v1632
          %v1649 = vtanh.pop %v1633
          %v1650 = vtanh.pop %v1634
          %v1651 = vtanh.pop %v1635
          %v1652 = vtanh.pop %v1636
          %v1653 = vtanh.pop %v1637
          %v1654 = vtanh.pop %v1638
          %v1655 = vtanh.pop %v1639
          %v1656 = vtanh.pop %v1640
          %v1657 = vtanh.pop %v1641
          %v1658 = vtanh.pop %v1642
          %v1659 = vtanh.pop %v1643
          %v1660 = vtanh.pop %v1644
          %v1661 = vpack.c.bf16 %v1646, %v1645
          %v1662 = vpack.c.bf16 %v1648, %v1647
          %v1663 = vpack.c.bf16 %v1650, %v1649
          %v1664 = vpack.c.bf16 %v1652, %v1651
          %v1665 = vpack.c.bf16 %v1654, %v1653
          %v1666 = vpack.c.bf16 %v1656, %v1655
          %v1667 = vpack.c.bf16 %v1658, %v1657
          %v1668 = vpack.c.bf16 %v1660, %v1659
          %v1677 = vunpack.c.l.b16 %v1661
          %v1678 = vunpack.c.h.b16 %v1661
          %v1679 = vunpack.c.l.b16 %v1662
          %v1680 = vunpack.c.h.b16 %v1662
          %v1681 = vunpack.c.l.b16 %v1663
          %v1682 = vunpack.c.h.b16 %v1663
          %v1683 = vunpack.c.l.b16 %v1664
          %v1684 = vunpack.c.h.b16 %v1664
          %v1685 = vunpack.c.l.b16 %v1665
          %v1686 = vunpack.c.h.b16 %v1665
          %v1687 = vunpack.c.l.b16 %v1666
          %v1688 = vunpack.c.h.b16 %v1666
          %v1689 = vunpack.c.l.b16 %v1667
          %v1690 = vunpack.c.h.b16 %v1667
          %v1691 = vunpack.c.l.b16 %v1668
          %v1692 = vunpack.c.h.b16 %v1668
          %v1693 = vpack.c.b16 %v1677, %v1677
          %v1694 = vpack.c.b16 %v1678, %v1678
          %v1695 = vpack.c.b16 %v1679, %v1679
          %v1696 = vpack.c.b16 %v1680, %v1680
          %v1697 = vpack.c.b16 %v1681, %v1681
          %v1698 = vpack.c.b16 %v1682, %v1682
          %v1699 = vpack.c.b16 %v1683, %v1683
          %v1700 = vpack.c.b16 %v1684, %v1684
          %v1701 = vpack.c.b16 %v1685, %v1685
          %v1702 = vpack.c.b16 %v1686, %v1686
          %v1703 = vpack.c.b16 %v1687, %v1687
          %v1704 = vpack.c.b16 %v1688, %v1688
          %v1705 = vpack.c.b16 %v1689, %v1689
          %v1706 = vpack.c.b16 %v1690, %v1690
          %v1707 = vpack.c.b16 %v1691, %v1691
          %v1708 = vpack.c.b16 %v1692, %v1692
          %1709 = vrot.lane.b32.xlu0 %v1693, 64
          %v1710 = vpop.permute.xlu0 %1709
          %1711 = vrot.lane.b32.xlu0 %v1694, 64
          %v1712 = vpop.permute.xlu0 %1711
          %1713 = vrot.lane.b32.xlu0 %v1695, 64
          %v1714 = vpop.permute.xlu0 %1713
          %1715 = vrot.lane.b32.xlu0 %v1696, 64
          %v1716 = vpop.permute.xlu0 %1715
          %1717 = vrot.lane.b32.xlu0 %v1697, 64
          %v1718 = vpop.permute.xlu0 %1717
          %1719 = vrot.lane.b32.xlu0 %v1698, 64
          %v1720 = vpop.permute.xlu0 %1719
          %1721 = vrot.lane.b32.xlu0 %v1699, 64
          %v1722 = vpop.permute.xlu0 %1721
          %1723 = vrot.lane.b32.xlu0 %v1700, 64
          %v1724 = vpop.permute.xlu0 %1723
          %1725 = vrot.lane.b32.xlu0 %v1701, 64
          %v1726 = vpop.permute.xlu0 %1725
          %1727 = vrot.lane.b32.xlu0 %v1702, 64
          %v1728 = vpop.permute.xlu0 %1727
          %1729 = vrot.lane.b32.xlu0 %v1703, 64
          %v1730 = vpop.permute.xlu0 %1729
          %1731 = vrot.lane.b32.xlu0 %v1704, 64
          %v1732 = vpop.permute.xlu0 %1731
          %1733 = vrot.lane.b32.xlu0 %v1705, 64
          %v1734 = vpop.permute.xlu0 %1733
          %1735 = vrot.lane.b32.xlu0 %v1706, 64
          %v1736 = vpop.permute.xlu0 %1735
          %1737 = vrot.lane.b32.xlu0 %v1707, 64
          %v1738 = vpop.permute.xlu0 %1737
          %1739 = vrot.lane.b32.xlu0 %v1708, 64
          %v1740 = vpop.permute.xlu0 %1739
          %s1757 = sshra.s32 %s1335, 3
          %s1758 = sand.u32 %s1335, 7
          %s1759 = smul.addr %s1757, 4
          %s1760 = scalar_lea.vmem [#allocation12], %s1759
          %vm1761 = vcmask 781824
          %1762 = vst.msk [vmem:[%s1760] sm:$0xf] %vm1761, %v1710
          %1763 = vst.msk [vmem:[%s1760 + $0x4] sm:$0xf] %vm1761, %v1712
          %1764 = vst.msk [vmem:[%s1760 + $0x8] sm:$0xf] %vm1761, %v1714
          %1765 = vst.msk [vmem:[%s1760 + $0xc] sm:$0xf] %vm1761, %v1716
          %1766 = vst.msk [vmem:[%s1760 + $0x10] sm:$0xf] %vm1761, %v1718
          %1767 = vst.msk [vmem:[%s1760 + $0x14] sm:$0xf] %vm1761, %v1720
          %1768 = vst.msk [vmem:[%s1760 + $0x18] sm:$0xf] %vm1761, %v1722
          %1769 = vst.msk [vmem:[%s1760 + $0x1c] sm:$0xf] %vm1761, %v1724
          %1770 = vst.msk [vmem:[%s1760 + $0x20] sm:$0xf] %vm1761, %v1726
          %1771 = vst.msk [vmem:[%s1760 + $0x24] sm:$0xf] %vm1761, %v1728
          %1772 = vst.msk [vmem:[%s1760 + $0x28] sm:$0xf] %vm1761, %v1730
          %1773 = vst.msk [vmem:[%s1760 + $0x2c] sm:$0xf] %vm1761, %v1732
          %1774 = vst.msk [vmem:[%s1760 + $0x30] sm:$0xf] %vm1761, %v1734
          %1775 = vst.msk [vmem:[%s1760 + $0x34] sm:$0xf] %vm1761, %v1736
          %1776 = vst.msk [vmem:[%s1760 + $0x38] sm:$0xf] %vm1761, %v1738
          %1777 = vst.msk [vmem:[%s1760 + $0x3c] sm:$0xf] %vm1761, %v1740
        $region92: #{tpu_custom_call.1} parent=39 // pred_fallthru
          _
        %p1778 = scmp.eq.s32.totalorder %s24, 3
        // Predicated region
        $region93: #{tpu_custom_call.1} parent=39 // pred_check
          %p1779 = pneg %p1778
        $region94: #{tpu_custom_call.1} parent=39 // pred_check_branch
          %1781 = sbr.rel (%p1779) target = $region96
        $region95: #{tpu_custom_call.1} parent=39 // pred_region
          %v1782 = vld [vmem:[#allocation11 + $0x3] sm:$0x1]
          %v1783 = vlaneseq
          %v1784 = vshrl.u32 %v1783, 7
          %v1785 = vsub.s32 0, %v1784
          %v1786 = vrot.slane %v1782, %v1785
          %v1787 = vadd.f32 %v1273, %v1786
          %v1788 = vadd.f32 %v1276, %v1786
          %v1789 = vadd.f32 %v1281, %v1786
          %v1790 = vadd.f32 %v1284, %v1786
          %v1791 = vadd.f32 %v1289, %v1786
          %v1792 = vadd.f32 %v1292, %v1786
          %v1793 = vadd.f32 %v1297, %v1786
          %v1794 = vadd.f32 %v1300, %v1786
          %v1795 = vadd.f32 %v1305, %v1786
          %v1796 = vadd.f32 %v1308, %v1786
          %v1797 = vadd.f32 %v1313, %v1786
          %v1798 = vadd.f32 %v1316, %v1786
          %v1799 = vadd.f32 %v1321, %v1786
          %v1800 = vadd.f32 %v1324, %v1786
          %v1801 = vadd.f32 %v1329, %v1786
          %v1802 = vadd.f32 %v1332, %v1786
          %v1803 = vtanh.pop %v1787
          %v1804 = vtanh.pop %v1788
          %v1805 = vtanh.pop %v1789
          %v1806 = vtanh.pop %v1790
          %v1807 = vtanh.pop %v1791
          %v1808 = vtanh.pop %v1792
          %v1809 = vtanh.pop %v1793
          %v1810 = vtanh.pop %v1794
          %v1811 = vtanh.pop %v1795
          %v1812 = vtanh.pop %v1796
          %v1813 = vtanh.pop %v1797
          %v1814 = vtanh.pop %v1798
          %v1815 = vtanh.pop %v1799
          %v1816 = vtanh.pop %v1800
          %v1817 = vtanh.pop %v1801
          %v1818 = vtanh.pop %v1802
          %v1819 = vpack.c.bf16 %v1804, %v1803
          %v1820 = vpack.c.bf16 %v1806, %v1805
          %v1821 = vpack.c.bf16 %v1808, %v1807
          %v1822 = vpack.c.bf16 %v1810, %v1809
          %v1823 = vpack.c.bf16 %v1812, %v1811
          %v1824 = vpack.c.bf16 %v1814, %v1813
          %v1825 = vpack.c.bf16 %v1816, %v1815
          %v1826 = vpack.c.bf16 %v1818, %v1817
          %v1835 = vunpack.c.l.b16 %v1819
          %v1836 = vunpack.c.h.b16 %v1819
          %v1837 = vunpack.c.l.b16 %v1820
          %v1838 = vunpack.c.h.b16 %v1820
          %v1839 = vunpack.c.l.b16 %v1821
          %v1840 = vunpack.c.h.b16 %v1821
          %v1841 = vunpack.c.l.b16 %v1822
          %v1842 = vunpack.c.h.b16 %v1822
          %v1843 = vunpack.c.l.b16 %v1823
          %v1844 = vunpack.c.h.b16 %v1823
          %v1845 = vunpack.c.l.b16 %v1824
          %v1846 = vunpack.c.h.b16 %v1824
          %v1847 = vunpack.c.l.b16 %v1825
          %v1848 = vunpack.c.h.b16 %v1825
          %v1849 = vunpack.c.l.b16 %v1826
          %v1850 = vunpack.c.h.b16 %v1826
          %v1851 = vpack.c.b16 %v1835, %v1835
          %v1852 = vpack.c.b16 %v1836, %v1836
          %v1853 = vpack.c.b16 %v1837, %v1837
          %v1854 = vpack.c.b16 %v1838, %v1838
          %v1855 = vpack.c.b16 %v1839, %v1839
          %v1856 = vpack.c.b16 %v1840, %v1840
          %v1857 = vpack.c.b16 %v1841, %v1841
          %v1858 = vpack.c.b16 %v1842, %v1842
          %v1859 = vpack.c.b16 %v1843, %v1843
          %v1860 = vpack.c.b16 %v1844, %v1844
          %v1861 = vpack.c.b16 %v1845, %v1845
          %v1862 = vpack.c.b16 %v1846, %v1846
          %v1863 = vpack.c.b16 %v1847, %v1847
          %v1864 = vpack.c.b16 %v1848, %v1848
          %v1865 = vpack.c.b16 %v1849, %v1849
          %v1866 = vpack.c.b16 %v1850, %v1850
          %1867 = vrot.lane.b32.xlu0 %v1851, 96
          %v1868 = vpop.permute.xlu0 %1867
          %1869 = vrot.lane.b32.xlu0 %v1852, 96
          %v1870 = vpop.permute.xlu0 %1869
          %1871 = vrot.lane.b32.xlu0 %v1853, 96
          %v1872 = vpop.permute.xlu0 %1871
          %1873 = vrot.lane.b32.xlu0 %v1854, 96
          %v1874 = vpop.permute.xlu0 %1873
          %1875 = vrot.lane.b32.xlu0 %v1855, 96
          %v1876 = vpop.permute.xlu0 %1875
          %1877 = vrot.lane.b32.xlu0 %v1856, 96
          %v1878 = vpop.permute.xlu0 %1877
          %1879 = vrot.lane.b32.xlu0 %v1857, 96
          %v1880 = vpop.permute.xlu0 %1879
          %1881 = vrot.lane.b32.xlu0 %v1858, 96
          %v1882 = vpop.permute.xlu0 %1881
          %1883 = vrot.lane.b32.xlu0 %v1859, 96
          %v1884 = vpop.permute.xlu0 %1883
          %1885 = vrot.lane.b32.xlu0 %v1860, 96
          %v1886 = vpop.permute.xlu0 %1885
          %1887 = vrot.lane.b32.xlu0 %v1861, 96
          %v1888 = vpop.permute.xlu0 %1887
          %1889 = vrot.lane.b32.xlu0 %v1862, 96
          %v1890 = vpop.permute.xlu0 %1889
          %1891 = vrot.lane.b32.xlu0 %v1863, 96
          %v1892 = vpop.permute.xlu0 %1891
          %1893 = vrot.lane.b32.xlu0 %v1864, 96
          %v1894 = vpop.permute.xlu0 %1893
          %1895 = vrot.lane.b32.xlu0 %v1865, 96
          %v1896 = vpop.permute.xlu0 %1895
          %1897 = vrot.lane.b32.xlu0 %v1866, 96
          %v1898 = vpop.permute.xlu0 %1897
          %s1915 = sshra.s32 %s1335, 3
          %s1916 = sand.u32 %s1335, 7
          %s1917 = smul.addr %s1915, 4
          %s1918 = scalar_lea.vmem [#allocation12], %s1917
          %vm1919 = vcmask 1044224
          %1920 = vst.msk [vmem:[%s1918] sm:$0xf] %vm1919, %v1868
          %1921 = vst.msk [vmem:[%s1918 + $0x4] sm:$0xf] %vm1919, %v1870
          %1922 = vst.msk [vmem:[%s1918 + $0x8] sm:$0xf] %vm1919, %v1872
          %1923 = vst.msk [vmem:[%s1918 + $0xc] sm:$0xf] %vm1919, %v1874
          %1924 = vst.msk [vmem:[%s1918 + $0x10] sm:$0xf] %vm1919, %v1876
          %1925 = vst.msk [vmem:[%s1918 + $0x14] sm:$0xf] %vm1919, %v1878
          %1926 = vst.msk [vmem:[%s1918 + $0x18] sm:$0xf] %vm1919, %v1880
          %1927 = vst.msk [vmem:[%s1918 + $0x1c] sm:$0xf] %vm1919, %v1882
          %1928 = vst.msk [vmem:[%s1918 + $0x20] sm:$0xf] %vm1919, %v1884
          %1929 = vst.msk [vmem:[%s1918 + $0x24] sm:$0xf] %vm1919, %v1886
          %1930 = vst.msk [vmem:[%s1918 + $0x28] sm:$0xf] %vm1919, %v1888
          %1931 = vst.msk [vmem:[%s1918 + $0x2c] sm:$0xf] %vm1919, %v1890
          %1932 = vst.msk [vmem:[%s1918 + $0x30] sm:$0xf] %vm1919, %v1892
          %1933 = vst.msk [vmem:[%s1918 + $0x34] sm:$0xf] %vm1919, %v1894
          %1934 = vst.msk [vmem:[%s1918 + $0x38] sm:$0xf] %vm1919, %v1896
          %1935 = vst.msk [vmem:[%s1918 + $0x3c] sm:$0xf] %vm1919, %v1898
        $region96: #{tpu_custom_call.1} parent=39 // pred_fallthru
          _
        // Predicated region
        $region97: #{tpu_custom_call.1} parent=39 // pred_check
          %p1936 = pneg %p155
        $region98: #{tpu_custom_call.1} parent=39 // pred_check_branch
          %1938 = sbr.rel (%p1936) target = $region100
        $region99: #{tpu_custom_call.1} parent=39 // pred_region
          %s1940 = ssub.s32 1024, 1024
          %1941 = vsyncadd [#allocation5], %s1940
          %s1942 = sshll.u32 [#allocation12], 4
          %s1943 = int_to_ptr.vmem [resolvable:$true] %s1942
          %1948 = dma.vmem_to_hbm [thread:$0]  %s1943, 1024, %s5, [#allocation5], 64, 64, 4
        $region100: #{tpu_custom_call.1} parent=39 // pred_fallthru
          _
        // Predicated region
        $region101: #{tpu_custom_call.1} parent=39 // pred_check
          %p1949 = pneg %p155
        $region102: #{tpu_custom_call.1} parent=39 // pred_check_branch
          %1951 = sbr.rel (%p1949) target = $region104
        $region103: #{tpu_custom_call.1} parent=39 // pred_region
          %1952 = dma.done [#allocation5], 1024
        $region104: #{tpu_custom_call.1} parent=39 // pred_fallthru
          _
      $region40: #{tpu_custom_call.1} parent=5 // pred_fallthru
        _
      %p1953 = scmp.le.s32.totalorder 2, %s15
      // Predicated region
      $region105: #{tpu_custom_call.1} parent=5 // pred_check
        %p1954 = pneg %p1953
      $region106: #{tpu_custom_call.1} parent=5 // pred_check_branch
        %1956 = sbr.rel (%p1954) target = $region108
      $region107: #{tpu_custom_call.1} parent=5 // pred_region
        %s1957 = ssub.s32 %s15, 2
      $region108: #{tpu_custom_call.1} parent=5 // pred_fallthru
        _
    $region6: #{tpu_custom_call.1} parent=1 // loop_footer
      %s19 = sadd.s32 1, %s15
    $region7: #{tpu_custom_call.1} parent=1 // loop_footer_branch
      %14 = sbr.rel target = $region3
    $region8: #{tpu_custom_call.1} parent=1 // loop_exit
      _
    %1958 = vsyncpa [#allocation4], 1
    %s1959 = scalar_lea.sflag [#allocation4], 1
    %1960 = vsyncpa %s1959, 1
    %1961 = vsyncpa [#allocation7], 1
    %1962 = vsyncpa [#allocation10], 1
    %1963 = vsyncpa [#allocation5], 1
    %s1964 = scalar_lea.sflag [#allocation5], 1
    %1965 = vsyncpa %s1964, 1

</llo_original>
